<compile_context>
chip_gen: v5e
topology: v5e:2x2
jax: 0.10.0
libtpu: 0.0.40
codegen_flags: <defaults>
</compile_context>

<pallas_src>
import functools
import math

import jax
import jax.numpy as jnp
from jax.experimental import pallas as pl
from jax.experimental.pallas import tpu as pltpu


def _layernorm(x, gamma, beta, eps):
    # PyTorch LayerNorm: biased variance over the last dim (f32 math).
    mean = jnp.mean(x, axis=-1, keepdims=True)
    var = jnp.mean((x - mean) ** 2, axis=-1, keepdims=True)
    return (x - mean) * jax.lax.rsqrt(var + eps) * gamma + beta


def _block_kernel(*refs, num_heads, head_dim, eps, has_mask, compute_dtype):
    if has_mask:
        (xq_ref, xf_ref, bias_ref,
         wq_ref, wkv_ref, wo_ref,
         ln1g_ref, ln1b_ref,
         w1_ref, b1_ref, w2_ref, b2_ref,
         ln2g_ref, ln2b_ref,
         out_ref, attn_ref,
         k_scr, v_scr) = refs
    else:
        (xq_ref, xf_ref,
         wq_ref, wkv_ref, wo_ref,
         ln1g_ref, ln1b_ref,
         w1_ref, b1_ref, w2_ref, b2_ref,
         ln2g_ref, ln2b_ref,
         out_ref, attn_ref,
         k_scr, v_scr) = refs
        bias_ref = None

    qi = pl.program_id(1)
    D = num_heads * head_dim
    TQ = xq_ref.shape[1]
    S = xf_ref.shape[1]
    scale = 1.0 / math.sqrt(head_dim)

    # --- K / V projections: computed once per batch row, cached in VMEM ------
    @pl.when(qi == 0)
    def _():
        xf = xf_ref[0].astype(compute_dtype)                       # (S, D)
        kv = jnp.dot(xf, wkv_ref[...],
                     preferred_element_type=jnp.float32)           # (S, 2D) f32
        k_scr[...] = kv[:, :D].astype(compute_dtype)
        v_scr[...] = kv[:, D:].astype(compute_dtype)

    # --- Q projection for this query tile (scale folded into q) --------------
    xq = xq_ref[0]                                                  # (TQ, D) f32
    q = jnp.dot(xq.astype(compute_dtype), wq_ref[...],
                preferred_element_type=jnp.float32)                 # (TQ, D) f32
    q = (q * scale).astype(compute_dtype)

    # head-major layout: (H, TQ, hd) / (H, S, hd) — batched MXU ops, no concat
    q_h = jnp.transpose(q.reshape(TQ, num_heads, head_dim), (1, 0, 2))
    k_h = jnp.transpose(k_scr[...].reshape(S, num_heads, head_dim), (1, 0, 2))
    v_h = jnp.transpose(v_scr[...].reshape(S, num_heads, head_dim), (1, 0, 2))

    logits = jnp.einsum('hqd,hkd->hqk', q_h, k_h,
                        preferred_element_type=jnp.float32)         # (H, TQ, S)
    if has_mask:
        # bias was pre-scaled by (-1e9 / sqrt(head_dim)) in the wrapper.
        logits = logits + bias_ref[0, 0]

    # softmax (f32)
    logits = logits - jnp.max(logits, axis=-1, keepdims=True)
    p = jnp.exp(logits)
    p = p * pl.reciprocal(jnp.sum(p, axis=-1, keepdims=True), approx=True)
    attn_ref[0] = p                                                 # (H, TQ, S)

    ctx_h = jnp.einsum('hqk,hkd->hqd', p.astype(compute_dtype), v_h,
                       preferred_element_type=jnp.float32)          # (H, TQ, hd)
    ctx = jnp.transpose(ctx_h, (1, 0, 2)).reshape(TQ, D)
    attn_out = jnp.dot(ctx.astype(compute_dtype), wo_ref[...],
                       preferred_element_type=jnp.float32)          # (TQ, D)

    # residual + LayerNorm (self_ln)
    h1 = _layernorm(xq + attn_out, ln1g_ref[0], ln1b_ref[0], eps)

    # --- feed-forward ---------------------------------------------------------
    ff = jnp.dot(h1.astype(compute_dtype), w1_ref[...],
                 preferred_element_type=jnp.float32) + b1_ref[0]
    ff = jnp.maximum(ff, 0.0)
    ff = jnp.dot(ff.astype(compute_dtype), w2_ref[...],
                 preferred_element_type=jnp.float32) + b2_ref[0]

    # residual + LayerNorm (ffn_ln)
    out_ref[0] = _layernorm(h1 + ff, ln2g_ref[0], ln2b_ref[0], eps)


def _prep_layer(p, compute_dtype):
    """Pre-transpose weights to (in, out), fuse K/V, cast MXU operands to bf16."""
    return {
        "wq": jnp.asarray(p["wq"]).T.astype(compute_dtype),             # (D, D)
        "wkv": jnp.concatenate([jnp.asarray(p["wk"]).T,
                                jnp.asarray(p["wv"]).T],
                               axis=1).astype(compute_dtype),           # (D, 2D)
        "wo": jnp.asarray(p["wo"]).T.astype(compute_dtype),             # (D, D)
        "w1": jnp.asarray(p["w1"]).T.astype(compute_dtype),             # (D, F)
        "w2": jnp.asarray(p["w2"]).T.astype(compute_dtype),             # (F, D)
        "b1": p["b1"].astype(jnp.float32),
        "b2": p["b2"].astype(jnp.float32),
        "ln1_g": p["ln1_g"].astype(jnp.float32),
        "ln1_b": p["ln1_b"].astype(jnp.float32),
        "ln2_g": p["ln2_g"].astype(jnp.float32),
        "ln2_b": p["ln2_b"].astype(jnp.float32),
    }


def transformer_block(x, bias, p, *, num_heads, eps, tq, compute_dtype):
    B, S, D = x.shape
    head_dim = D // num_heads
    F = p["w1"].shape[1]
    nq = S // tq
    has_mask = bias is not None

    kernel = functools.partial(_block_kernel, num_heads=num_heads,
                               head_dim=head_dim, eps=eps,
                               has_mask=has_mask, compute_dtype=compute_dtype)

    # Grid-invariant (constant index_map) operands: DMA'd only on batch change.
    const = lambda shape: pl.BlockSpec(shape, lambda b, q: (0,) * len(shape))

    in_specs = [
        pl.BlockSpec((1, tq, D), lambda b, q: (b, q, 0)),   # x query tile
        pl.BlockSpec((1, S, D), lambda b, q: (b, 0, 0)),    # full x (for K/V)
    ]
    inputs = [x, x]
    if has_mask:
        in_specs.append(pl.BlockSpec((1, 1, tq, S), lambda b, q: (b, 0, q, 0)))
        inputs.append(bias)
    in_specs += [
        const((D, D)), const((D, 2 * D)), const((D, D)),    # wq, wkv, wo
        const((1, D)), const((1, D)),                       # ln1 gamma/beta
        const((D, F)), const((1, F)),                       # w1, b1
        const((F, D)), const((1, D)),                       # w2, b2
        const((1, D)), const((1, D)),                       # ln2 gamma/beta
    ]
    inputs += [p["wq"], p["wkv"], p["wo"], p["ln1_g"], p["ln1_b"],
               p["w1"], p["b1"], p["w2"], p["b2"], p["ln2_g"], p["ln2_b"]]

    grid_spec = pltpu.PrefetchScalarGridSpec(
        num_scalar_prefetch=0,
        grid=(B, nq),
        in_specs=in_specs,
        out_specs=[
            pl.BlockSpec((1, tq, D), lambda b, q: (b, q, 0)),             # hidden
            pl.BlockSpec((1, num_heads, tq, S), lambda b, q: (b, 0, q, 0)),  # attn
        ],
        scratch_shapes=[pltpu.VMEM((S, D), compute_dtype),   # cached K
                        pltpu.VMEM((S, D), compute_dtype)],  # cached V
    )

    out, attn = pl.pallas_call(
        kernel,
        out_shape=(jax.ShapeDtypeStruct((B, S, D), jnp.float32),
                   jax.ShapeDtypeStruct((B, num_heads, S, S), jnp.float32)),
        grid_spec=grid_spec,
        compiler_params=pltpu.CompilerParams(
            # q axis must stay "arbitrary": K/V scratch written at q==0 is
            # reused by later q tiles of the same batch row.
            dimension_semantics=("parallel", "arbitrary"),
            vmem_limit_bytes=64 * 1024 * 1024),
    )(*inputs)
    return out, attn


def transformer_encoder(x, layer_params, *, num_heads, eps, attn_mask=None,
                        tq=None, compute_dtype=jnp.bfloat16):
    B, S, D = x.shape
    assert D % num_heads == 0
    head_dim = D // num_heads

    if tq is None:
        tq = S
        for cand in (256, 128):
            if S % cand == 0:
                tq = cand
                break
    assert S % tq == 0

    if attn_mask is None:
        bias = None  # mask-free kernel variant: no zero-mask DMA / add
    else:
        # Fold both the -1e9 mask add and the 1/sqrt(head_dim) scale into one
        # precomputed bias:  (logits + mask*-1e9)/sqrt(hd)
        #                 == logits/sqrt(hd) + mask*(-1e9/sqrt(hd))
        bias = (attn_mask[:, :, :S, :S].astype(jnp.float32)
                * (-1e9 / math.sqrt(head_dim)))

    prepped = [_prep_layer(p, compute_dtype) for p in layer_params]

    attn_scores = []
    embeds = x.astype(jnp.float32)
    for p in prepped:
        embeds, scores = transformer_block(embeds, bias, p,
                                           num_heads=num_heads, eps=eps,
                                           tq=tq, compute_dtype=compute_dtype)
        attn_scores.append(scores)
    return embeds, attn_scores


def init_layer_params(key, d_model, ffn_dim):
    # PyTorch Linear convention: weight is (out_features, in_features).
    ks = jax.random.split(key, 6)
    s = 1.0 / math.sqrt(d_model)
    return {
        "wq": jax.random.uniform(ks[0], (d_model, d_model), jnp.float32, -s, s),
        "wk": jax.random.uniform(ks[1], (d_model, d_model), jnp.float32, -s, s),
        "wv": jax.random.uniform(ks[2], (d_model, d_model), jnp.float32, -s, s),
        "wo": jax.random.uniform(ks[3], (d_model, d_model), jnp.float32, -s, s),
        "ln1_g": jnp.ones((1, d_model), jnp.float32),
        "ln1_b": jnp.zeros((1, d_model), jnp.float32),
        "w1": jax.random.uniform(ks[4], (ffn_dim, d_model), jnp.float32, -s, s),
        "b1": jnp.zeros((1, ffn_dim), jnp.float32),
        "w2": jax.random.uniform(ks[5], (d_model, ffn_dim), jnp.float32,
                                 -1.0 / math.sqrt(ffn_dim), 1.0 / math.sqrt(ffn_dim)),
        "b2": jnp.zeros((1, d_model), jnp.float32),
        "ln2_g": jnp.ones((1, d_model), jnp.float32),
        "ln2_b": jnp.zeros((1, d_model), jnp.float32),
    }


if __name__ == "__main__":
    # config consistent with the module (small, synthetic)
    config = dict(d_model=32, num_heads=4, dim_feedforward=64,
                  num_encoder_layers=2, dropout=0.0, layer_norm_eps=1e-5)
    B, S = 2, 8
    D = config["d_model"]

    key = jax.random.PRNGKey(0)
    kx, *layer_keys = jax.random.split(key, config["num_encoder_layers"] + 1)
    x = jax.random.normal(kx, (B, S, D), jnp.float32)
    layer_params = [init_layer_params(k, D, config["dim_feedforward"])
                    for k in layer_keys]

    last_hidden, attn_scores = transformer_encoder(
        x, layer_params, num_heads=config["num_heads"],
        eps=config["layer_norm_eps"], attn_mask=None)

    jax.block_until_ready(last_hidden)
    for a in attn_scores:
        jax.block_until_ready(a)

    assert last_hidden.shape == (B, S, D)
    assert all(a.shape == (B, config["num_heads"], S, S) for a in attn_scores)
    print("KERNEL_OK")
</pallas_src>

<mosaic_0001>
module attributes {stable_mosaic.version = 11 : i64} {
  func.func @_block_kernel(%arg0: i32, %arg1: i32, %arg2: memref<1x8x32xf32, #tpu.memory_space<vmem>>, %arg3: memref<1x8x32xf32, #tpu.memory_space<vmem>>, %arg4: memref<32x32xbf16, #tpu.memory_space<vmem>>, %arg5: memref<32x64xbf16, #tpu.memory_space<vmem>>, %arg6: memref<32x32xbf16, #tpu.memory_space<vmem>>, %arg7: memref<1x32xf32, #tpu.memory_space<vmem>>, %arg8: memref<1x32xf32, #tpu.memory_space<vmem>>, %arg9: memref<32x64xbf16, #tpu.memory_space<vmem>>, %arg10: memref<1x64xf32, #tpu.memory_space<vmem>>, %arg11: memref<64x32xbf16, #tpu.memory_space<vmem>>, %arg12: memref<1x32xf32, #tpu.memory_space<vmem>>, %arg13: memref<1x32xf32, #tpu.memory_space<vmem>>, %arg14: memref<1x32xf32, #tpu.memory_space<vmem>>, %arg15: memref<1x8x32xf32, #tpu.memory_space<vmem>>, %arg16: memref<1x4x8x8xf32, #tpu.memory_space<vmem>>, %arg17: memref<8x32xbf16, #tpu.memory_space<vmem>>, %arg18: memref<8x32xbf16, #tpu.memory_space<vmem>>) attributes {dimension_semantics = [#tpu.dimension_semantics<parallel>, #tpu.dimension_semantics<arbitrary>], iteration_bounds = array<i64: 2, 1>, scalar_prefetch = 0 : i64, scratch_operands = 2 : i64, tpu.core_type = #tpu.core_type<tc>, window_params = [{transform_indices = @transform_0, window_bounds = array<i64: 1, 8, 32>}, {transform_indices = @transform_1, window_bounds = array<i64: 1, 8, 32>}, {pipeline_mode = #tpu.pipeline_mode<synchronous>, transform_indices = @transform_2, window_bounds = array<i64: 32, 32>}, {pipeline_mode = #tpu.pipeline_mode<synchronous>, transform_indices = @transform_3, window_bounds = array<i64: 32, 64>}, {pipeline_mode = #tpu.pipeline_mode<synchronous>, transform_indices = @transform_4, window_bounds = array<i64: 32, 32>}, {pipeline_mode = #tpu.pipeline_mode<synchronous>, transform_indices = @transform_5, window_bounds = array<i64: 1, 32>}, {pipeline_mode = #tpu.pipeline_mode<synchronous>, transform_indices = @transform_6, window_bounds = array<i64: 1, 32>}, {pipeline_mode = #tpu.pipeline_mode<synchronous>, transform_indices = @transform_7, window_bounds = array<i64: 32, 64>}, {pipeline_mode = #tpu.pipeline_mode<synchronous>, transform_indices = @transform_8, window_bounds = array<i64: 1, 64>}, {pipeline_mode = #tpu.pipeline_mode<synchronous>, transform_indices = @transform_9, window_bounds = array<i64: 64, 32>}, {pipeline_mode = #tpu.pipeline_mode<synchronous>, transform_indices = @transform_10, window_bounds = array<i64: 1, 32>}, {pipeline_mode = #tpu.pipeline_mode<synchronous>, transform_indices = @transform_11, window_bounds = array<i64: 1, 32>}, {pipeline_mode = #tpu.pipeline_mode<synchronous>, transform_indices = @transform_12, window_bounds = array<i64: 1, 32>}, {transform_indices = @transform_13, window_bounds = array<i64: 1, 8, 32>}, {transform_indices = @transform_14, window_bounds = array<i64: 1, 4, 8, 8>}]} {
    %c0_i32 = arith.constant 0 : i32
    %0 = arith.cmpi eq, %arg1, %c0_i32 : i32
    %1 = arith.extui %0 : i1 to i32
    %c0_i32_0 = arith.constant 0 : i32
    %2 = arith.cmpi ne, %1, %c0_i32_0 : i32
    scf.if %2 {
      %c0_53 = arith.constant 0 : index
      %c0_54 = arith.constant 0 : index
      %c0_55 = arith.constant 0 : index
      %119 = vector.load %arg3[%c0_53, %c0_54, %c0_55] : memref<1x8x32xf32, #tpu.memory_space<vmem>>, vector<1x8x32xf32>
      %120 = vector.shape_cast %119 : vector<1x8x32xf32> to vector<8x32xf32>
      %121 = arith.truncf %120 : vector<8x32xf32> to vector<8x32xbf16>
      %c0_56 = arith.constant 0 : index
      %c0_57 = arith.constant 0 : index
      %122 = vector.load %arg5[%c0_56, %c0_57] : memref<32x64xbf16, #tpu.memory_space<vmem>>, vector<32x64xbf16>
      %cst_58 = arith.constant dense<0.000000e+00> : vector<8x64xf32>
      %123 = tpu.matmul %121, %122, %cst_58 {dimension_numbers = #tpu.dot_dimension_numbers<[1], [0], [0], [1], [0, 0, 1, 1], [], []>} : vector<8x32xbf16>, vector<32x64xbf16>, vector<8x64xf32> -> vector<8x64xf32>
      %124 = vector.extract_strided_slice %123 {offsets = [0, 0], sizes = [8, 32], strides = [1, 1]} : vector<8x64xf32> to vector<8x32xf32>
      %125 = arith.truncf %124 : vector<8x32xf32> to vector<8x32xbf16>
      %c0_59 = arith.constant 0 : index
      %c0_60 = arith.constant 0 : index
      %126 = vector.load %arg17[%c0_59, %c0_60] : memref<8x32xbf16, #tpu.memory_space<vmem>>, vector<8x32xbf16>
      tpu.vector_store %arg17[%c0_59, %c0_60], %125 {strides = array<i32>} : memref<8x32xbf16, #tpu.memory_space<vmem>>, vector<8x32xbf16>,
      %127 = vector.extract_strided_slice %123 {offsets = [0, 32], sizes = [8, 32], strides = [1, 1]} : vector<8x64xf32> to vector<8x32xf32>
      %128 = arith.truncf %127 : vector<8x32xf32> to vector<8x32xbf16>
      %c0_61 = arith.constant 0 : index
      %c0_62 = arith.constant 0 : index
      %129 = vector.load %arg18[%c0_61, %c0_62] : memref<8x32xbf16, #tpu.memory_space<vmem>>, vector<8x32xbf16>
      tpu.vector_store %arg18[%c0_61, %c0_62], %128 {strides = array<i32>} : memref<8x32xbf16, #tpu.memory_space<vmem>>, vector<8x32xbf16>,
    } else {
    }
    %c0 = arith.constant 0 : index
    %c0_1 = arith.constant 0 : index
    %c0_2 = arith.constant 0 : index
    %3 = vector.load %arg2[%c0, %c0_1, %c0_2] : memref<1x8x32xf32, #tpu.memory_space<vmem>>, vector<1x8x32xf32>
    %4 = vector.shape_cast %3 : vector<1x8x32xf32> to vector<8x32xf32>
    %5 = arith.truncf %4 : vector<8x32xf32> to vector<8x32xbf16>
    %c0_3 = arith.constant 0 : index
    %c0_4 = arith.constant 0 : index
    %6 = vector.load %arg4[%c0_3, %c0_4] : memref<32x32xbf16, #tpu.memory_space<vmem>>, vector<32x32xbf16>
    %cst = arith.constant dense<0.000000e+00> : vector<8x32xf32>
    %7 = tpu.matmul %5, %6, %cst {dimension_numbers = #tpu.dot_dimension_numbers<[1], [0], [0], [1], [0, 0, 1, 1], [], []>} : vector<8x32xbf16>, vector<32x32xbf16>, vector<8x32xf32> -> vector<8x32xf32>
    %cst_5 = arith.constant 0.353553385 : f32
    %8 = vector.broadcast %cst_5 : f32 to vector<8x32xf32>
    %9 = arith.mulf %7, %8 : vector<8x32xf32>
    %10 = arith.truncf %9 : vector<8x32xf32> to vector<8x32xbf16>
    %11 = vector.shape_cast %10 : vector<8x32xbf16> to vector<8x4x8xbf16>
    %12 = tpu.transpose %11, [1, 0, 2] : vector<8x4x8xbf16> -> vector<4x8x8xbf16>
    %c0_6 = arith.constant 0 : index
    %c0_7 = arith.constant 0 : index
    %13 = vector.load %arg17[%c0_6, %c0_7] : memref<8x32xbf16, #tpu.memory_space<vmem>>, vector<8x32xbf16>
    %14 = vector.shape_cast %13 : vector<8x32xbf16> to vector<8x4x8xbf16>
    %15 = tpu.transpose %14, [1, 0, 2] : vector<8x4x8xbf16> -> vector<4x8x8xbf16>
    %c0_8 = arith.constant 0 : index
    %c0_9 = arith.constant 0 : index
    %16 = vector.load %arg18[%c0_8, %c0_9] : memref<8x32xbf16, #tpu.memory_space<vmem>>, vector<8x32xbf16>
    %17 = vector.shape_cast %16 : vector<8x32xbf16> to vector<8x4x8xbf16>
    %18 = tpu.transpose %17, [1, 0, 2] : vector<8x4x8xbf16> -> vector<4x8x8xbf16>
    "tpu.trace_start"() <{level = 10 : i32, message = "hqd,hkd->hqk"}> : () -> ()
    %cst_10 = arith.constant dense<0.000000e+00> : vector<4x8x8xf32>
    %19 = tpu.matmul %12, %15, %cst_10 {dimension_numbers = #tpu.dot_dimension_numbers<[2], [2], [1], [1], [0, 0, 0, 1, 1, 1], [0], [0]>} : vector<4x8x8xbf16>, vector<4x8x8xbf16>, vector<4x8x8xf32> -> vector<4x8x8xf32>
    "tpu.trace_stop"() : () -> ()
    %cst_11 = arith.constant dense<0xFF800000> : vector<4x8xf32>
    %20 = vector.multi_reduction <maximumf>, %19, %cst_11 [2] : vector<4x8x8xf32> to vector<4x8xf32>
    %21 = vector.shape_cast %20 : vector<4x8xf32> to vector<4x8x1xf32>
    %22 = vector.broadcast %21 : vector<4x8x1xf32> to vector<4x8x8xf32>
    %23 = arith.subf %19, %22 : vector<4x8x8xf32>
    %24 = math.exp %23 : vector<4x8x8xf32>
    %cst_12 = arith.constant dense<0.000000e+00> : vector<4x8xf32>
    %25 = vector.multi_reduction <add>, %24, %cst_12 [2] : vector<4x8x8xf32> to vector<4x8xf32>
    %26 = vector.shape_cast %25 : vector<4x8xf32> to vector<4x8x1xf32>
    %27 = tpu.reciprocal %26 {approx = true} : vector<4x8x1xf32> -> vector<4x8x1xf32>
    %28 = vector.broadcast %27 : vector<4x8x1xf32> to vector<4x8x8xf32>
    %29 = arith.mulf %24, %28 : vector<4x8x8xf32>
    %c0_13 = arith.constant 0 : index
    %c0_14 = arith.constant 0 : index
    %c0_15 = arith.constant 0 : index
    %c0_16 = arith.constant 0 : index
    %30 = vector.load %arg16[%c0_13, %c0_14, %c0_15, %c0_16] : memref<1x4x8x8xf32, #tpu.memory_space<vmem>>, vector<1x4x8x8xf32>
    %31 = vector.shape_cast %30 : vector<1x4x8x8xf32> to vector<4x8x8xf32>
    %32 = vector.shape_cast %29 : vector<4x8x8xf32> to vector<1x4x8x8xf32>
    tpu.vector_store %arg16[%c0_13, %c0_14, %c0_15, %c0_16], %32 {strides = array<i32>} : memref<1x4x8x8xf32, #tpu.memory_space<vmem>>, vector<1x4x8x8xf32>,
    %33 = arith.truncf %29 : vector<4x8x8xf32> to vector<4x8x8xbf16>
    "tpu.trace_start"() <{level = 10 : i32, message = "hqk,hkd->hqd"}> : () -> ()
    %cst_17 = arith.constant dense<0.000000e+00> : vector<4x8x8xf32>
    %34 = tpu.matmul %33, %18, %cst_17 {dimension_numbers = #tpu.dot_dimension_numbers<[2], [1], [1], [2], [0, 0, 0, 1, 1, 2], [0], [0]>} : vector<4x8x8xbf16>, vector<4x8x8xbf16>, vector<4x8x8xf32> -> vector<4x8x8xf32>
    "tpu.trace_stop"() : () -> ()
    %35 = tpu.transpose %34, [1, 0, 2] : vector<4x8x8xf32> -> vector<8x4x8xf32>
    %36 = vector.shape_cast %35 : vector<8x4x8xf32> to vector<8x32xf32>
    %37 = arith.truncf %36 : vector<8x32xf32> to vector<8x32xbf16>
    %c0_18 = arith.constant 0 : index
    %c0_19 = arith.constant 0 : index
    %38 = vector.load %arg6[%c0_18, %c0_19] : memref<32x32xbf16, #tpu.memory_space<vmem>>, vector<32x32xbf16>
    %cst_20 = arith.constant dense<0.000000e+00> : vector<8x32xf32>
    %39 = tpu.matmul %37, %38, %cst_20 {dimension_numbers = #tpu.dot_dimension_numbers<[1], [0], [0], [1], [0, 0, 1, 1], [], []>} : vector<8x32xbf16>, vector<32x32xbf16>, vector<8x32xf32> -> vector<8x32xf32>
    %40 = arith.addf %4, %39 : vector<8x32xf32>
    %c0_21 = arith.constant 0 : index
    %c0_22 = arith.constant 0 : index
    %41 = vector.load %arg7[%c0_21, %c0_22] : memref<1x32xf32, #tpu.memory_space<vmem>>, vector<1x32xf32>
    %42 = vector.shape_cast %41 : vector<1x32xf32> to vector<32xf32>
    %c0_23 = arith.constant 0 : index
    %c0_24 = arith.constant 0 : index
    %43 = vector.load %arg8[%c0_23, %c0_24] : memref<1x32xf32, #tpu.memory_space<vmem>>, vector<1x32xf32>
    %44 = vector.shape_cast %43 : vector<1x32xf32> to vector<32xf32>
    %cst_25 = arith.constant dense<0.000000e+00> : vector<8xf32>
    %45 = vector.multi_reduction <add>, %40, %cst_25 [1] : vector<8x32xf32> to vector<8xf32>
    %46 = vector.shape_cast %45 : vector<8xf32> to vector<8x1xf32>
    %cst_26 = arith.constant 3.200000e+01 : f32
    %47 = vector.broadcast %cst_26 : f32 to vector<8x1xf32>
    %48 = arith.divf %46, %47 : vector<8x1xf32>
    %49 = vector.broadcast %48 : vector<8x1xf32> to vector<8x32xf32>
    %50 = arith.subf %40, %49 : vector<8x32xf32>
    %51 = arith.mulf %50, %50 : vector<8x32xf32>
    %cst_27 = arith.constant dense<0.000000e+00> : vector<8xf32>
    %52 = vector.multi_reduction <add>, %51, %cst_27 [1] : vector<8x32xf32> to vector<8xf32>
    %53 = vector.shape_cast %52 : vector<8xf32> to vector<8x1xf32>
    %cst_28 = arith.constant 3.200000e+01 : f32
    %54 = vector.broadcast %cst_28 : f32 to vector<8x1xf32>
    %55 = arith.divf %53, %54 : vector<8x1xf32>
    %56 = vector.broadcast %48 : vector<8x1xf32> to vector<8x32xf32>
    %57 = arith.subf %40, %56 : vector<8x32xf32>
    %cst_29 = arith.constant 9.99999974E-6 : f32
    %58 = vector.broadcast %cst_29 : f32 to vector<8x1xf32>
    %59 = arith.addf %55, %58 : vector<8x1xf32>
    %60 = math.rsqrt %59 : vector<8x1xf32>
    %61 = vector.broadcast %60 : vector<8x1xf32> to vector<8x32xf32>
    %62 = arith.mulf %57, %61 : vector<8x32xf32>
    %63 = vector.shape_cast %42 : vector<32xf32> to vector<1x32xf32>
    %64 = vector.broadcast %63 : vector<1x32xf32> to vector<8x32xf32>
    %65 = arith.mulf %62, %64 : vector<8x32xf32>
    %66 = vector.shape_cast %44 : vector<32xf32> to vector<1x32xf32>
    %67 = vector.broadcast %66 : vector<1x32xf32> to vector<8x32xf32>
    %68 = arith.addf %65, %67 : vector<8x32xf32>
    %69 = arith.truncf %68 : vector<8x32xf32> to vector<8x32xbf16>
    %c0_30 = arith.constant 0 : index
    %c0_31 = arith.constant 0 : index
    %70 = vector.load %arg9[%c0_30, %c0_31] : memref<32x64xbf16, #tpu.memory_space<vmem>>, vector<32x64xbf16>
    %cst_32 = arith.constant dense<0.000000e+00> : vector<8x64xf32>
    %71 = tpu.matmul %69, %70, %cst_32 {dimension_numbers = #tpu.dot_dimension_numbers<[1], [0], [0], [1], [0, 0, 1, 1], [], []>} : vector<8x32xbf16>, vector<32x64xbf16>, vector<8x64xf32> -> vector<8x64xf32>
    %c0_33 = arith.constant 0 : index
    %c0_34 = arith.constant 0 : index
    %72 = vector.load %arg10[%c0_33, %c0_34] : memref<1x64xf32, #tpu.memory_space<vmem>>, vector<1x64xf32>
    %73 = vector.shape_cast %72 : vector<1x64xf32> to vector<64xf32>
    %74 = vector.shape_cast %73 : vector<64xf32> to vector<1x64xf32>
    %75 = vector.broadcast %74 : vector<1x64xf32> to vector<8x64xf32>
    %76 = arith.addf %71, %75 : vector<8x64xf32>
    %cst_35 = arith.constant 0.000000e+00 : f32
    %77 = vector.broadcast %cst_35 : f32 to vector<8x64xf32>
    %78 = arith.maximumf %76, %77 : vector<8x64xf32>
    %79 = arith.truncf %78 : vector<8x64xf32> to vector<8x64xbf16>
    %c0_36 = arith.constant 0 : index
    %c0_37 = arith.constant 0 : index
    %80 = vector.load %arg11[%c0_36, %c0_37] : memref<64x32xbf16, #tpu.memory_space<vmem>>, vector<64x32xbf16>
    %cst_38 = arith.constant dense<0.000000e+00> : vector<8x32xf32>
    %81 = tpu.matmul %79, %80, %cst_38 {dimension_numbers = #tpu.dot_dimension_numbers<[1], [0], [0], [1], [0, 0, 1, 1], [], []>} : vector<8x64xbf16>, vector<64x32xbf16>, vector<8x32xf32> -> vector<8x32xf32>
    %c0_39 = arith.constant 0 : index
    %c0_40 = arith.constant 0 : index
    %82 = vector.load %arg12[%c0_39, %c0_40] : memref<1x32xf32, #tpu.memory_space<vmem>>, vector<1x32xf32>
    %83 = vector.shape_cast %82 : vector<1x32xf32> to vector<32xf32>
    %84 = vector.shape_cast %83 : vector<32xf32> to vector<1x32xf32>
    %85 = vector.broadcast %84 : vector<1x32xf32> to vector<8x32xf32>
    %86 = arith.addf %81, %85 : vector<8x32xf32>
    %87 = arith.addf %68, %86 : vector<8x32xf32>
    %c0_41 = arith.constant 0 : index
    %c0_42 = arith.constant 0 : index
    %88 = vector.load %arg13[%c0_41, %c0_42] : memref<1x32xf32, #tpu.memory_space<vmem>>, vector<1x32xf32>
    %89 = vector.shape_cast %88 : vector<1x32xf32> to vector<32xf32>
    %c0_43 = arith.constant 0 : index
    %c0_44 = arith.constant 0 : index
    %90 = vector.load %arg14[%c0_43, %c0_44] : memref<1x32xf32, #tpu.memory_space<vmem>>, vector<1x32xf32>
    %91 = vector.shape_cast %90 : vector<1x32xf32> to vector<32xf32>
    %cst_45 = arith.constant dense<0.000000e+00> : vector<8xf32>
    %92 = vector.multi_reduction <add>, %87, %cst_45 [1] : vector<8x32xf32> to vector<8xf32>
    %93 = vector.shape_cast %92 : vector<8xf32> to vector<8x1xf32>
    %cst_46 = arith.constant 3.200000e+01 : f32
    %94 = vector.broadcast %cst_46 : f32 to vector<8x1xf32>
    %95 = arith.divf %93, %94 : vector<8x1xf32>
    %96 = vector.broadcast %95 : vector<8x1xf32> to vector<8x32xf32>
    %97 = arith.subf %87, %96 : vector<8x32xf32>
    %98 = arith.mulf %97, %97 : vector<8x32xf32>
    %cst_47 = arith.constant dense<0.000000e+00> : vector<8xf32>
    %99 = vector.multi_reduction <add>, %98, %cst_47 [1] : vector<8x32xf32> to vector<8xf32>
    %100 = vector.shape_cast %99 : vector<8xf32> to vector<8x1xf32>
    %cst_48 = arith.constant 3.200000e+01 : f32
    %101 = vector.broadcast %cst_48 : f32 to vector<8x1xf32>
    %102 = arith.divf %100, %101 : vector<8x1xf32>
    %103 = vector.broadcast %95 : vector<8x1xf32> to vector<8x32xf32>
    %104 = arith.subf %87, %103 : vector<8x32xf32>
    %cst_49 = arith.constant 9.99999974E-6 : f32
    %105 = vector.broadcast %cst_49 : f32 to vector<8x1xf32>
    %106 = arith.addf %102, %105 : vector<8x1xf32>
    %107 = math.rsqrt %106 : vector<8x1xf32>
    %108 = vector.broadcast %107 : vector<8x1xf32> to vector<8x32xf32>
    %109 = arith.mulf %104, %108 : vector<8x32xf32>
    %110 = vector.shape_cast %89 : vector<32xf32> to vector<1x32xf32>
    %111 = vector.broadcast %110 : vector<1x32xf32> to vector<8x32xf32>
    %112 = arith.mulf %109, %111 : vector<8x32xf32>
    %113 = vector.shape_cast %91 : vector<32xf32> to vector<1x32xf32>
    %114 = vector.broadcast %113 : vector<1x32xf32> to vector<8x32xf32>
    %115 = arith.addf %112, %114 : vector<8x32xf32>
    %c0_50 = arith.constant 0 : index
    %c0_51 = arith.constant 0 : index
    %c0_52 = arith.constant 0 : index
    %116 = vector.load %arg15[%c0_50, %c0_51, %c0_52] : memref<1x8x32xf32, #tpu.memory_space<vmem>>, vector<1x8x32xf32>
    %117 = vector.shape_cast %116 : vector<1x8x32xf32> to vector<8x32xf32>
    %118 = vector.shape_cast %115 : vector<8x32xf32> to vector<1x8x32xf32>
    tpu.vector_store %arg15[%c0_50, %c0_51, %c0_52], %118 {strides = array<i32>} : memref<1x8x32xf32, #tpu.memory_space<vmem>>, vector<1x8x32xf32>,
    return
  }
  func.func @transform_0(%arg0: i32, %arg1: i32) -> (i32, i32, i32) {
    %c0_i32 = arith.constant 0 : i32
    %c0_i32_0 = arith.constant 0 : i32
    return %arg0, %arg1, %c0_i32 : i32, i32, i32
  }
  func.func @transform_1(%arg0: i32, %arg1: i32) -> (i32, i32, i32) {
    %c0_i32 = arith.constant 0 : i32
    %c0_i32_0 = arith.constant 0 : i32
    %c0_i32_1 = arith.constant 0 : i32
    return %arg0, %c0_i32, %c0_i32_0 : i32, i32, i32
  }
  func.func @transform_2(%arg0: i32, %arg1: i32) -> (i32, i32) {
    %c0_i32 = arith.constant 0 : i32
    %c0_i32_0 = arith.constant 0 : i32
    %c0_i32_1 = arith.constant 0 : i32
    return %c0_i32, %c0_i32_0 : i32, i32
  }
  func.func @transform_3(%arg0: i32, %arg1: i32) -> (i32, i32) {
    %c0_i32 = arith.constant 0 : i32
    %c0_i32_0 = arith.constant 0 : i32
    %c0_i32_1 = arith.constant 0 : i32
    return %c0_i32, %c0_i32_0 : i32, i32
  }
  func.func @transform_4(%arg0: i32, %arg1: i32) -> (i32, i32) {
    %c0_i32 = arith.constant 0 : i32
    %c0_i32_0 = arith.constant 0 : i32
    %c0_i32_1 = arith.constant 0 : i32
    return %c0_i32, %c0_i32_0 : i32, i32
  }
  func.func @transform_5(%arg0: i32, %arg1: i32) -> (i32, i32) {
    %c0_i32 = arith.constant 0 : i32
    %c0_i32_0 = arith.constant 0 : i32
    %c0_i32_1 = arith.constant 0 : i32
    return %c0_i32, %c0_i32_0 : i32, i32
  }
  func.func @transform_6(%arg0: i32, %arg1: i32) -> (i32, i32) {
    %c0_i32 = arith.constant 0 : i32
    %c0_i32_0 = arith.constant 0 : i32
    %c0_i32_1 = arith.constant 0 : i32
    return %c0_i32, %c0_i32_0 : i32, i32
  }
  func.func @transform_7(%arg0: i32, %arg1: i32) -> (i32, i32) {
    %c0_i32 = arith.constant 0 : i32
    %c0_i32_0 = arith.constant 0 : i32
    %c0_i32_1 = arith.constant 0 : i32
    return %c0_i32, %c0_i32_0 : i32, i32
  }
  func.func @transform_8(%arg0: i32, %arg1: i32) -> (i32, i32) {
    %c0_i32 = arith.constant 0 : i32
    %c0_i32_0 = arith.constant 0 : i32
    %c0_i32_1 = arith.constant 0 : i32
    return %c0_i32, %c0_i32_0 : i32, i32
  }
  func.func @transform_9(%arg0: i32, %arg1: i32) -> (i32, i32) {
    %c0_i32 = arith.constant 0 : i32
    %c0_i32_0 = arith.constant 0 : i32
    %c0_i32_1 = arith.constant 0 : i32
    return %c0_i32, %c0_i32_0 : i32, i32
  }
  func.func @transform_10(%arg0: i32, %arg1: i32) -> (i32, i32) {
    %c0_i32 = arith.constant 0 : i32
    %c0_i32_0 = arith.constant 0 : i32
    %c0_i32_1 = arith.constant 0 : i32
    return %c0_i32, %c0_i32_0 : i32, i32
  }
  func.func @transform_11(%arg0: i32, %arg1: i32) -> (i32, i32) {
    %c0_i32 = arith.constant 0 : i32
    %c0_i32_0 = arith.constant 0 : i32
    %c0_i32_1 = arith.constant 0 : i32
    return %c0_i32, %c0_i32_0 : i32, i32
  }
  func.func @transform_12(%arg0: i32, %arg1: i32) -> (i32, i32) {
    %c0_i32 = arith.constant 0 : i32
    %c0_i32_0 = arith.constant 0 : i32
    %c0_i32_1 = arith.constant 0 : i32
    return %c0_i32, %c0_i32_0 : i32, i32
  }
  func.func @transform_13(%arg0: i32, %arg1: i32) -> (i32, i32, i32) {
    %c0_i32 = arith.constant 0 : i32
    %c0_i32_0 = arith.constant 0 : i32
    return %arg0, %arg1, %c0_i32 : i32, i32, i32
  }
  func.func @transform_14(%arg0: i32, %arg1: i32) -> (i32, i32, i32, i32) {
    %c0_i32 = arith.constant 0 : i32
    %c0_i32_0 = arith.constant 0 : i32
    %c0_i32_1 = arith.constant 0 : i32
    return %arg0, %c0_i32, %arg1, %c0_i32_0 : i32, i32, i32, i32
  }
}

</mosaic_0001>

<llo_original>
// kernel: tpu_custom_call.1
$region0: #{tpu_custom_call.1}
  #allocation0 [shape = 'u32[]', space=smem, size = 0x4, offset = 0x4, fixed_abs, tag = 'smem constant byte address 0x4 - core index']
  #allocation1 [shape = 'u32[72,128]{1,0:T(1,128)}', space=vmem, size = 0x9000, scoped, tag = 'internal scratch']
  #allocation2 [shape = 'bf16[8,32]{1,0:T(8,128)(2,1)}', space=vmem, size = 0x800, scoped, tag = 'scratch operand']
  #allocation3 [shape = 'bf16[8,32]{1,0:T(8,128)(2,1)}', space=vmem, size = 0x800, scoped, tag = 'scratch operand']
  %s0 = inlined_call_operand.vmem [shape: f32[2,8,32], index: 0, kind: input, shape index: {}]
  %s1 = inlined_call_operand.vmem [shape: f32[2,8,32], index: 1, kind: input, shape index: {}]
  %s2 = inlined_call_operand.vmem [shape: bf16[32,32], index: 2, kind: input, shape index: {}]
  %s3 = inlined_call_operand.hbm [shape: bf16[32,64], index: 3, kind: input, shape index: {}]
  %s4 = inlined_call_operand.hbm [shape: bf16[32,32], index: 4, kind: input, shape index: {}]
  %s5 = inlined_call_operand.vmem [shape: f32[1,32], index: 5, kind: input, shape index: {}]
  %s6 = inlined_call_operand.vmem [shape: f32[1,32], index: 6, kind: input, shape index: {}]
  %s7 = inlined_call_operand.hbm [shape: bf16[32,64], index: 7, kind: input, shape index: {}]
  %s8 = inlined_call_operand.vmem [shape: f32[1,64], index: 8, kind: input, shape index: {}]
  %s9 = inlined_call_operand.vmem [shape: bf16[64,32], index: 9, kind: input, shape index: {}]
  %s10 = inlined_call_operand.vmem [shape: f32[1,32], index: 10, kind: input, shape index: {}]
  %s11 = inlined_call_operand.vmem [shape: f32[1,32], index: 11, kind: input, shape index: {}]
  %s12 = inlined_call_operand.vmem [shape: f32[1,32], index: 12, kind: input, shape index: {}]
  %s13 = inlined_call_operand.hbm [shape: f32[2,8,32], index: 13, kind: output, shape index: {0}]
  %s14 = inlined_call_operand.hbm [shape: f32[2,4,8,8], index: 14, kind: output, shape index: {1}]
  %15 = xla_tuple %s13, %s14
  %s16 = sld [smem:[#allocation0]]
  $region109: #{tpu_custom_call.1} parent=0
    _
  %s18 = ssub.s32 1, %s16
  %s19 = scalar_select 0, %s18, %s16
  $region1: #{tpu_custom_call.1} parent=0
    #allocation4 [shape = 'u8[8192]{0}', space=vmem, size = 0x2000, scoped, tag = 'input window, operand 3, single buffered']
    #allocation5 [shape = 's32[2]{0}', space=sflag, size = 0x8, scoped, tag = 'scoped memory for tpu_custom_call.1']
    #allocation6 [shape = 's32[2]{0}', space=sflag, size = 0x8, scoped, tag = 'scoped memory for tpu_custom_call.1']
    #allocation7 [shape = 'u8[8192]{0}', space=vmem, size = 0x2000, scoped, tag = 'input window, operand 4, single buffered']
    #allocation8 [shape = 's32[1]{0}', space=sflag, size = 0x4, scoped, tag = 'scoped memory for tpu_custom_call.1']
    #allocation9 [shape = 'u8[8192]{0}', space=vmem, size = 0x2000, scoped, tag = 'input window, operand 7, single buffered']
    #allocation10 [shape = 'u8[8192]{0}', space=vmem, size = 0x2000, scoped, tag = 'output window, operand 0']
    #allocation11 [shape = 'u8[32768]{0}', space=vmem, size = 0x8000, scoped, tag = 'output window, operand 1']
    #allocation12 [shape = 's32[2]{0}', space=sflag, size = 0x8, scoped, tag = 'scoped memory for tpu_custom_call.1']
    %20 = vsyncpa [#allocation5], 0
    %21 = vsyncpa [#allocation8], 0
    %22 = vsyncpa [#allocation6], 0
    %s23 = scalar_lea.sflag [#allocation6], 1
    %24 = vsyncpa %s23, 0
    %25 = vsyncpa [#allocation12], 0
    %s26 = scalar_lea.sflag [#allocation12], 1
    %27 = vsyncpa %s26, 0
    loop: start=0, step=1, limit=4
    $region2: #{tpu_custom_call.1} parent=1 // loop_pre_header
      _
    $region3: #{tpu_custom_call.1} parent=1 // loop_header
      %s29 = sphi 0, %s33
      %p30 = scmp.ge.s32.totalorder %s29, 4
      %s36 = sphi 0, %s48
      %s37 = sphi 0, %s44
      %s38 = sphi 0, %s36
      %s39 = sphi 0, %s37
      %s40 = sphi 0, %s38
      %s41 = sphi 0, %s39
      %s53 = sphi 0, %s55
      %s56 = sphi 0, %s53
      %s57 = sphi 0, %s56
      %s73 = sphi 0, %s57
      %s79 = sphi 0, %s81
      %s82 = sphi 0, %s79
      %s83 = sphi 0, %s82
      %s99 = sphi 0, %s83
      %s103 = sphi 0, %s103
      %s105 = sphi 0, %s103
      %s106 = sphi 0, %s105
      %s120 = sphi 0, %s106
      %s124 = sphi 0, %s124
      %s126 = sphi 0, %s124
      %s127 = sphi 0, %s126
      %s141 = sphi 0, %s127
      %s145 = sphi 0, %s145
      %s147 = sphi 0, %s145
      %s148 = sphi 0, %s147
      %s162 = sphi 0, %s148
      %s166 = sphi 0, %s166
      %s168 = sphi 0, %s166
      %s169 = sphi 0, %s168
      %s183 = sphi 0, %s169
      %s187 = sphi 0, %s187
      %s189 = sphi 0, %s187
      %s190 = sphi 0, %s189
      %s204 = sphi 0, %s190
      %s208 = sphi 0, %s208
      %s210 = sphi 0, %s208
      %s211 = sphi 0, %s210
      %s225 = sphi 0, %s211
      %s229 = sphi 0, %s229
      %s231 = sphi 0, %s229
      %s232 = sphi 0, %s231
      %s246 = sphi 0, %s232
      %s250 = sphi 0, %s250
      %s252 = sphi 0, %s250
      %s253 = sphi 0, %s252
      %s267 = sphi 0, %s253
      %s271 = sphi 0, %s271
      %s273 = sphi 0, %s271
      %s274 = sphi 0, %s273
      %s288 = sphi 0, %s274
      %s292 = sphi 0, %s292
      %s294 = sphi 0, %s292
      %s295 = sphi 0, %s294
      %s309 = sphi 0, %s295
      %s313 = sphi 0, %s313
      %s315 = sphi 0, %s313
      %s316 = sphi 0, %s315
      %s330 = sphi 0, %s316
      %s338 = sphi 0, %s340
      %s341 = sphi 0, %s338
      %s342 = sphi 0, %s341
      %s358 = sphi 0, %s342
      %s366 = sphi 0, %s368
      %s369 = sphi 0, %s366
      %s370 = sphi 0, %s369
      %s386 = sphi 0, %s370
    $region4: #{tpu_custom_call.1} parent=1 // loop_header_branch
      %32 = sbr.rel (%p30) target = $region8
    $region5: #{tpu_custom_call.1} parent=1 // loop_body
      %s34 = ssub.s32 %s29, 1
      %s35 = ssub.s32 %s29, 2
      %s42 = sadd.s32 1, %s37
      %p43 = scmp.ge.s32.totalorder %s42, 1
      %s44 = scalar_select %p43, 0, %s42
      %s45 = sadd.s32 1, %s36
      %s46 = scalar_select %p43, %s45, %s36
      %p47 = scmp.ge.s32.totalorder %s46, 2
      %s48 = scalar_select %p47, 0, %s46
      %s49 = ssub.s32 %s36, %s48
      %s50 = ssub.s32 %s37, %s44
      %s51 = sor.u32 %s49, %s50
      %p52 = scmp.eq.s32.totalorder %s51, 0
      %s54 = sadd.s32 %s53, 1
      %s55 = scalar_select %p52, %s53, %s54
      %p58 = pneg %p52
      %p59 = scmp.eq.s32.totalorder %s29, 1
      %p60 = por %p58, %p59
      %p61 = scmp.ne.s32.totalorder %s53, %s56
      %p62 = scmp.eq.s32.totalorder %s29, 0
      %p63 = por %p61, %p62
      %p64 = scmp.ne.s32.totalorder %s53, %s56
      %p65 = scmp.eq.s32.totalorder %s34, 1
      %p66 = por %p64, %p65
      %p67 = scmp.ne.s32.totalorder %s56, %s57
      %p68 = scmp.eq.s32.totalorder %s34, 0
      %p69 = por %p67, %p68
      %p70 = scmp.ne.s32.totalorder %s56, %s57
      %p71 = scmp.eq.s32.totalorder %s35, 1
      %p72 = por %p70, %p71
      %p74 = scmp.ne.s32.totalorder %s57, %s73
      %p75 = scmp.eq.s32.totalorder %s35, 0
      %p76 = por %p74, %p75
      %s77 = ssub.s32 %s36, %s48
      %p78 = scmp.eq.s32.totalorder %s77, 0
      %s80 = sadd.s32 %s79, 1
      %s81 = scalar_select %p78, %s79, %s80
      %p84 = pneg %p78
      %p85 = scmp.eq.s32.totalorder %s29, 1
      %p86 = por %p84, %p85
      %p87 = scmp.ne.s32.totalorder %s79, %s82
      %p88 = scmp.eq.s32.totalorder %s29, 0
      %p89 = por %p87, %p88
      %p90 = scmp.ne.s32.totalorder %s79, %s82
      %p91 = scmp.eq.s32.totalorder %s34, 1
      %p92 = por %p90, %p91
      %p93 = scmp.ne.s32.totalorder %s82, %s83
      %p94 = scmp.eq.s32.totalorder %s34, 0
      %p95 = por %p93, %p94
      %p96 = scmp.ne.s32.totalorder %s82, %s83
      %p97 = scmp.eq.s32.totalorder %s35, 1
      %p98 = por %p96, %p97
      %p100 = scmp.ne.s32.totalorder %s83, %s99
      %p101 = scmp.eq.s32.totalorder %s35, 0
      %p102 = por %p100, %p101
      %s104 = sadd.s32 %s103, 1
      %p107 = scmp.eq.s32.totalorder %s29, 1
      %p108 = scmp.ne.s32.totalorder %s103, %s105
      %p109 = scmp.eq.s32.totalorder %s29, 0
      %p110 = por %p108, %p109
      %p111 = scmp.ne.s32.totalorder %s103, %s105
      %p112 = scmp.eq.s32.totalorder %s34, 1
      %p113 = por %p111, %p112
      %p114 = scmp.ne.s32.totalorder %s105, %s106
      %p115 = scmp.eq.s32.totalorder %s34, 0
      %p116 = por %p114, %p115
      %p117 = scmp.ne.s32.totalorder %s105, %s106
      %p118 = scmp.eq.s32.totalorder %s35, 1
      %p119 = por %p117, %p118
      %p121 = scmp.ne.s32.totalorder %s106, %s120
      %p122 = scmp.eq.s32.totalorder %s35, 0
      %p123 = por %p121, %p122
      %s125 = sadd.s32 %s124, 1
      %p128 = scmp.eq.s32.totalorder %s29, 1
      %p129 = scmp.ne.s32.totalorder %s124, %s126
      %p130 = scmp.eq.s32.totalorder %s29, 0
      %p131 = por %p129, %p130
      %p132 = scmp.ne.s32.totalorder %s124, %s126
      %p133 = scmp.eq.s32.totalorder %s34, 1
      %p134 = por %p132, %p133
      %p135 = scmp.ne.s32.totalorder %s126, %s127
      %p136 = scmp.eq.s32.totalorder %s34, 0
      %p137 = por %p135, %p136
      %p138 = scmp.ne.s32.totalorder %s126, %s127
      %p139 = scmp.eq.s32.totalorder %s35, 1
      %p140 = por %p138, %p139
      %p142 = scmp.ne.s32.totalorder %s127, %s141
      %p143 = scmp.eq.s32.totalorder %s35, 0
      %p144 = por %p142, %p143
      %s146 = sadd.s32 %s145, 1
      %p149 = scmp.eq.s32.totalorder %s29, 1
      %p150 = scmp.ne.s32.totalorder %s145, %s147
      %p151 = scmp.eq.s32.totalorder %s29, 0
      %p152 = por %p150, %p151
      %p153 = scmp.ne.s32.totalorder %s145, %s147
      %p154 = scmp.eq.s32.totalorder %s34, 1
      %p155 = por %p153, %p154
      %p156 = scmp.ne.s32.totalorder %s147, %s148
      %p157 = scmp.eq.s32.totalorder %s34, 0
      %p158 = por %p156, %p157
      %p159 = scmp.ne.s32.totalorder %s147, %s148
      %p160 = scmp.eq.s32.totalorder %s35, 1
      %p161 = por %p159, %p160
      %p163 = scmp.ne.s32.totalorder %s148, %s162
      %p164 = scmp.eq.s32.totalorder %s35, 0
      %p165 = por %p163, %p164
      %s167 = sadd.s32 %s166, 1
      %p170 = scmp.eq.s32.totalorder %s29, 1
      %p171 = scmp.ne.s32.totalorder %s166, %s168
      %p172 = scmp.eq.s32.totalorder %s29, 0
      %p173 = por %p171, %p172
      %p174 = scmp.ne.s32.totalorder %s166, %s168
      %p175 = scmp.eq.s32.totalorder %s34, 1
      %p176 = por %p174, %p175
      %p177 = scmp.ne.s32.totalorder %s168, %s169
      %p178 = scmp.eq.s32.totalorder %s34, 0
      %p179 = por %p177, %p178
      %p180 = scmp.ne.s32.totalorder %s168, %s169
      %p181 = scmp.eq.s32.totalorder %s35, 1
      %p182 = por %p180, %p181
      %p184 = scmp.ne.s32.totalorder %s169, %s183
      %p185 = scmp.eq.s32.totalorder %s35, 0
      %p186 = por %p184, %p185
      %s188 = sadd.s32 %s187, 1
      %p191 = scmp.eq.s32.totalorder %s29, 1
      %p192 = scmp.ne.s32.totalorder %s187, %s189
      %p193 = scmp.eq.s32.totalorder %s29, 0
      %p194 = por %p192, %p193
      %p195 = scmp.ne.s32.totalorder %s187, %s189
      %p196 = scmp.eq.s32.totalorder %s34, 1
      %p197 = por %p195, %p196
      %p198 = scmp.ne.s32.totalorder %s189, %s190
      %p199 = scmp.eq.s32.totalorder %s34, 0
      %p200 = por %p198, %p199
      %p201 = scmp.ne.s32.totalorder %s189, %s190
      %p202 = scmp.eq.s32.totalorder %s35, 1
      %p203 = por %p201, %p202
      %p205 = scmp.ne.s32.totalorder %s190, %s204
      %p206 = scmp.eq.s32.totalorder %s35, 0
      %p207 = por %p205, %p206
      %s209 = sadd.s32 %s208, 1
      %p212 = scmp.eq.s32.totalorder %s29, 1
      %p213 = scmp.ne.s32.totalorder %s208, %s210
      %p214 = scmp.eq.s32.totalorder %s29, 0
      %p215 = por %p213, %p214
      %p216 = scmp.ne.s32.totalorder %s208, %s210
      %p217 = scmp.eq.s32.totalorder %s34, 1
      %p218 = por %p216, %p217
      %p219 = scmp.ne.s32.totalorder %s210, %s211
      %p220 = scmp.eq.s32.totalorder %s34, 0
      %p221 = por %p219, %p220
      %p222 = scmp.ne.s32.totalorder %s210, %s211
      %p223 = scmp.eq.s32.totalorder %s35, 1
      %p224 = por %p222, %p223
      %p226 = scmp.ne.s32.totalorder %s211, %s225
      %p227 = scmp.eq.s32.totalorder %s35, 0
      %p228 = por %p226, %p227
      %s230 = sadd.s32 %s229, 1
      %p233 = scmp.eq.s32.totalorder %s29, 1
      %p234 = scmp.ne.s32.totalorder %s229, %s231
      %p235 = scmp.eq.s32.totalorder %s29, 0
      %p236 = por %p234, %p235
      %p237 = scmp.ne.s32.totalorder %s229, %s231
      %p238 = scmp.eq.s32.totalorder %s34, 1
      %p239 = por %p237, %p238
      %p240 = scmp.ne.s32.totalorder %s231, %s232
      %p241 = scmp.eq.s32.totalorder %s34, 0
      %p242 = por %p240, %p241
      %p243 = scmp.ne.s32.totalorder %s231, %s232
      %p244 = scmp.eq.s32.totalorder %s35, 1
      %p245 = por %p243, %p244
      %p247 = scmp.ne.s32.totalorder %s232, %s246
      %p248 = scmp.eq.s32.totalorder %s35, 0
      %p249 = por %p247, %p248
      %s251 = sadd.s32 %s250, 1
      %p254 = scmp.eq.s32.totalorder %s29, 1
      %p255 = scmp.ne.s32.totalorder %s250, %s252
      %p256 = scmp.eq.s32.totalorder %s29, 0
      %p257 = por %p255, %p256
      %p258 = scmp.ne.s32.totalorder %s250, %s252
      %p259 = scmp.eq.s32.totalorder %s34, 1
      %p260 = por %p258, %p259
      %p261 = scmp.ne.s32.totalorder %s252, %s253
      %p262 = scmp.eq.s32.totalorder %s34, 0
      %p263 = por %p261, %p262
      %p264 = scmp.ne.s32.totalorder %s252, %s253
      %p265 = scmp.eq.s32.totalorder %s35, 1
      %p266 = por %p264, %p265
      %p268 = scmp.ne.s32.totalorder %s253, %s267
      %p269 = scmp.eq.s32.totalorder %s35, 0
      %p270 = por %p268, %p269
      %s272 = sadd.s32 %s271, 1
      %p275 = scmp.eq.s32.totalorder %s29, 1
      %p276 = scmp.ne.s32.totalorder %s271, %s273
      %p277 = scmp.eq.s32.totalorder %s29, 0
      %p278 = por %p276, %p277
      %p279 = scmp.ne.s32.totalorder %s271, %s273
      %p280 = scmp.eq.s32.totalorder %s34, 1
      %p281 = por %p279, %p280
      %p282 = scmp.ne.s32.totalorder %s273, %s274
      %p283 = scmp.eq.s32.totalorder %s34, 0
      %p284 = por %p282, %p283
      %p285 = scmp.ne.s32.totalorder %s273, %s274
      %p286 = scmp.eq.s32.totalorder %s35, 1
      %p287 = por %p285, %p286
      %p289 = scmp.ne.s32.totalorder %s274, %s288
      %p290 = scmp.eq.s32.totalorder %s35, 0
      %p291 = por %p289, %p290
      %s293 = sadd.s32 %s292, 1
      %p296 = scmp.eq.s32.totalorder %s29, 1
      %p297 = scmp.ne.s32.totalorder %s292, %s294
      %p298 = scmp.eq.s32.totalorder %s29, 0
      %p299 = por %p297, %p298
      %p300 = scmp.ne.s32.totalorder %s292, %s294
      %p301 = scmp.eq.s32.totalorder %s34, 1
      %p302 = por %p300, %p301
      %p303 = scmp.ne.s32.totalorder %s294, %s295
      %p304 = scmp.eq.s32.totalorder %s34, 0
      %p305 = por %p303, %p304
      %p306 = scmp.ne.s32.totalorder %s294, %s295
      %p307 = scmp.eq.s32.totalorder %s35, 1
      %p308 = por %p306, %p307
      %p310 = scmp.ne.s32.totalorder %s295, %s309
      %p311 = scmp.eq.s32.totalorder %s35, 0
      %p312 = por %p310, %p311
      %s314 = sadd.s32 %s313, 1
      %p317 = scmp.eq.s32.totalorder %s29, 1
      %p318 = scmp.ne.s32.totalorder %s313, %s315
      %p319 = scmp.eq.s32.totalorder %s29, 0
      %p320 = por %p318, %p319
      %p321 = scmp.ne.s32.totalorder %s313, %s315
      %p322 = scmp.eq.s32.totalorder %s34, 1
      %p323 = por %p321, %p322
      %p324 = scmp.ne.s32.totalorder %s315, %s316
      %p325 = scmp.eq.s32.totalorder %s34, 0
      %p326 = por %p324, %p325
      %p327 = scmp.ne.s32.totalorder %s315, %s316
      %p328 = scmp.eq.s32.totalorder %s35, 1
      %p329 = por %p327, %p328
      %p331 = scmp.ne.s32.totalorder %s316, %s330
      %p332 = scmp.eq.s32.totalorder %s35, 0
      %p333 = por %p331, %p332
      %s334 = ssub.s32 %s36, %s48
      %s335 = ssub.s32 %s37, %s44
      %s336 = sor.u32 %s334, %s335
      %p337 = scmp.eq.s32.totalorder %s336, 0
      %s339 = sadd.s32 %s338, 1
      %s340 = scalar_select %p337, %s338, %s339
      %p343 = pneg %p337
      %p344 = scmp.eq.s32.totalorder %s29, 1
      %p345 = por %p343, %p344
      %p346 = scmp.ne.s32.totalorder %s338, %s341
      %p347 = scmp.eq.s32.totalorder %s29, 0
      %p348 = por %p346, %p347
      %p349 = scmp.ne.s32.totalorder %s338, %s341
      %p350 = scmp.eq.s32.totalorder %s34, 1
      %p351 = por %p349, %p350
      %p352 = scmp.ne.s32.totalorder %s341, %s342
      %p353 = scmp.eq.s32.totalorder %s34, 0
      %p354 = por %p352, %p353
      %p355 = scmp.ne.s32.totalorder %s341, %s342
      %p356 = scmp.eq.s32.totalorder %s35, 1
      %p357 = por %p355, %p356
      %p359 = scmp.ne.s32.totalorder %s342, %s358
      %p360 = scmp.eq.s32.totalorder %s35, 0
      %p361 = por %p359, %p360
      %s362 = ssub.s32 %s36, %s48
      %s363 = ssub.s32 %s37, %s44
      %s364 = sor.u32 %s362, %s363
      %p365 = scmp.eq.s32.totalorder %s364, 0
      %s367 = sadd.s32 %s366, 1
      %s368 = scalar_select %p365, %s366, %s367
      %p371 = pneg %p365
      %p372 = scmp.eq.s32.totalorder %s29, 1
      %p373 = por %p371, %p372
      %p374 = scmp.ne.s32.totalorder %s366, %s369
      %p375 = scmp.eq.s32.totalorder %s29, 0
      %p376 = por %p374, %p375
      %p377 = scmp.ne.s32.totalorder %s366, %s369
      %p378 = scmp.eq.s32.totalorder %s34, 1
      %p379 = por %p377, %p378
      %p380 = scmp.ne.s32.totalorder %s369, %s370
      %p381 = scmp.eq.s32.totalorder %s34, 0
      %p382 = por %p380, %p381
      %p383 = scmp.ne.s32.totalorder %s369, %s370
      %p384 = scmp.eq.s32.totalorder %s35, 1
      %p385 = por %p383, %p384
      %p387 = scmp.ne.s32.totalorder %s370, %s386
      %p388 = scmp.eq.s32.totalorder %s35, 0
      %p389 = por %p387, %p388
      %p390 = scmp.le.s32.totalorder 1, %s29
      %p391 = scmp.lt.s32.totalorder %s29, 3
      %p392 = pnand %p390, %p391
      %p393 = pneg %p392
      // Predicated region
      $region9: #{tpu_custom_call.1} parent=5 // pred_check
        _
      $region10: #{tpu_custom_call.1} parent=5 // pred_check_branch
        %395 = sbr.rel (%p392) target = $region12
      $region11: #{tpu_custom_call.1} parent=5 // pred_region
        %s396 = ssub.s32 %s29, 1
        // Predicated region
        $region13: #{tpu_custom_call.1} parent=11 // pred_check
          %p397 = pneg %p116
        $region14: #{tpu_custom_call.1} parent=11 // pred_check_branch
          %399 = sbr.rel (%p397) target = $region16
        $region15: #{tpu_custom_call.1} parent=11 // pred_region
          _
        $region16: #{tpu_custom_call.1} parent=11 // pred_fallthru
          _
        // Predicated region
        $region17: #{tpu_custom_call.1} parent=11 // pred_check
          %p400 = pneg %p137
        $region18: #{tpu_custom_call.1} parent=11 // pred_check_branch
          %402 = sbr.rel (%p400) target = $region20
        $region19: #{tpu_custom_call.1} parent=11 // pred_region
          %404 = vsyncadd [#allocation5], 0
          %s405 = sshll.u32 %s3, 4
          %s406 = int_to_ptr.hbm [resolvable:$true] %s405
          %s407 = sshll.u32 [#allocation4], 4
          %s408 = int_to_ptr.vmem [resolvable:$true] %s407
          %413 = dma.hbm_to_vmem [thread:$0]  %s406, 256, %s408, [#allocation5], 64, 64, 4
        $region20: #{tpu_custom_call.1} parent=11 // pred_fallthru
          _
        // Predicated region
        $region21: #{tpu_custom_call.1} parent=11 // pred_check
          %p414 = pneg %p158
        $region22: #{tpu_custom_call.1} parent=11 // pred_check_branch
          %416 = sbr.rel (%p414) target = $region24
        $region23: #{tpu_custom_call.1} parent=11 // pred_region
          %418 = vsyncadd [#allocation8], 0
          %s419 = sshll.u32 %s4, 4
          %s420 = int_to_ptr.hbm [resolvable:$true] %s419
          %s421 = sshll.u32 [#allocation7], 4
          %s422 = int_to_ptr.vmem [resolvable:$true] %s421
          %427 = dma.hbm_to_vmem [thread:$0]  %s420, 256, %s422, [#allocation8], 64, 64, 4
        $region24: #{tpu_custom_call.1} parent=11 // pred_fallthru
          _
        // Predicated region
        $region25: #{tpu_custom_call.1} parent=11 // pred_check
          %p428 = pneg %p179
        $region26: #{tpu_custom_call.1} parent=11 // pred_check_branch
          %430 = sbr.rel (%p428) target = $region28
        $region27: #{tpu_custom_call.1} parent=11 // pred_region
          _
        $region28: #{tpu_custom_call.1} parent=11 // pred_fallthru
          _
        // Predicated region
        $region29: #{tpu_custom_call.1} parent=11 // pred_check
          %p431 = pneg %p200
        $region30: #{tpu_custom_call.1} parent=11 // pred_check_branch
          %433 = sbr.rel (%p431) target = $region32
        $region31: #{tpu_custom_call.1} parent=11 // pred_region
          _
        $region32: #{tpu_custom_call.1} parent=11 // pred_fallthru
          _
        // Predicated region
        $region33: #{tpu_custom_call.1} parent=11 // pred_check
          %p434 = pneg %p221
        $region34: #{tpu_custom_call.1} parent=11 // pred_check_branch
          %436 = sbr.rel (%p434) target = $region36
        $region35: #{tpu_custom_call.1} parent=11 // pred_region
          %438 = vsyncadd [#allocation8], 0
          %s439 = sshll.u32 %s7, 4
          %s440 = int_to_ptr.hbm [resolvable:$true] %s439
          %s441 = sshll.u32 [#allocation9], 4
          %s442 = int_to_ptr.vmem [resolvable:$true] %s441
          %447 = dma.hbm_to_vmem [thread:$0]  %s440, 256, %s442, [#allocation8], 64, 64, 4
        $region36: #{tpu_custom_call.1} parent=11 // pred_fallthru
          _
        // Predicated region
        $region37: #{tpu_custom_call.1} parent=11 // pred_check
          %p448 = pneg %p242
        $region38: #{tpu_custom_call.1} parent=11 // pred_check_branch
          %450 = sbr.rel (%p448) target = $region40
        $region39: #{tpu_custom_call.1} parent=11 // pred_region
          _
        $region40: #{tpu_custom_call.1} parent=11 // pred_fallthru
          _
        // Predicated region
        $region41: #{tpu_custom_call.1} parent=11 // pred_check
          %p451 = pneg %p263
        $region42: #{tpu_custom_call.1} parent=11 // pred_check_branch
          %453 = sbr.rel (%p451) target = $region44
        $region43: #{tpu_custom_call.1} parent=11 // pred_region
          _
        $region44: #{tpu_custom_call.1} parent=11 // pred_fallthru
          _
        // Predicated region
        $region45: #{tpu_custom_call.1} parent=11 // pred_check
          %p454 = pneg %p284
        $region46: #{tpu_custom_call.1} parent=11 // pred_check_branch
          %456 = sbr.rel (%p454) target = $region48
        $region47: #{tpu_custom_call.1} parent=11 // pred_region
          _
        $region48: #{tpu_custom_call.1} parent=11 // pred_fallthru
          _
        // Predicated region
        $region49: #{tpu_custom_call.1} parent=11 // pred_check
          %p457 = pneg %p305
        $region50: #{tpu_custom_call.1} parent=11 // pred_check_branch
          %459 = sbr.rel (%p457) target = $region52
        $region51: #{tpu_custom_call.1} parent=11 // pred_region
          _
        $region52: #{tpu_custom_call.1} parent=11 // pred_fallthru
          _
        // Predicated region
        $region53: #{tpu_custom_call.1} parent=11 // pred_check
          %p460 = pneg %p326
        $region54: #{tpu_custom_call.1} parent=11 // pred_check_branch
          %462 = sbr.rel (%p460) target = $region56
        $region55: #{tpu_custom_call.1} parent=11 // pred_region
          _
        $region56: #{tpu_custom_call.1} parent=11 // pred_fallthru
          _
      $region12: #{tpu_custom_call.1} parent=5 // pred_fallthru
        _
      %p463 = scmp.lt.s32.totalorder %s29, 2
      // Predicated region
      $region57: #{tpu_custom_call.1} parent=5 // pred_check
        %p464 = pneg %p463
      $region58: #{tpu_custom_call.1} parent=5 // pred_check_branch
        %466 = sbr.rel (%p464) target = $region60
      $region59: #{tpu_custom_call.1} parent=5 // pred_region
        // Predicated region
        $region61: #{tpu_custom_call.1} parent=59 // pred_check
          %p467 = pneg %p63
        $region62: #{tpu_custom_call.1} parent=59 // pred_check_branch
          %469 = sbr.rel (%p467) target = $region64
        $region63: #{tpu_custom_call.1} parent=59 // pred_region
          %p470 = scmp.lt.s32.totalorder %s36, 1
          %s471 = scalar_select %p470, %s36, 1
          %p472 = scmp.lt.s32.totalorder %s37, 0
          %s473 = scalar_select %p472, %s37, 0
          %s474 = sadd.s32 %s473, %s471
          %s475 = smul.addr %s474, 8
          %s476 = scalar_lea.vmem %s0, %s475
        $region64: #{tpu_custom_call.1} parent=59 // pred_fallthru
          _
        // Predicated region
        $region65: #{tpu_custom_call.1} parent=59 // pred_check
          %p477 = pneg %p89
        $region66: #{tpu_custom_call.1} parent=59 // pred_check_branch
          %479 = sbr.rel (%p477) target = $region68
        $region67: #{tpu_custom_call.1} parent=59 // pred_region
          %p480 = scmp.lt.s32.totalorder %s36, 1
          %s481 = scalar_select %p480, %s36, 1
          %s482 = smul.addr %s481, 8
          %s483 = scalar_lea.vmem %s1, %s482
        $region68: #{tpu_custom_call.1} parent=59 // pred_fallthru
          _
      $region60: #{tpu_custom_call.1} parent=5 // pred_fallthru
        _
      %p484 = scmp.le.s32.totalorder 1, %s29
      %p485 = scmp.lt.s32.totalorder %s29, 3
      %p486 = pnand %p484, %p485
      %p487 = pneg %p486
      // Predicated region
      $region69: #{tpu_custom_call.1} parent=5 // pred_check
        _
      $region70: #{tpu_custom_call.1} parent=5 // pred_check_branch
        %489 = sbr.rel (%p486) target = $region72
      $region71: #{tpu_custom_call.1} parent=5 // pred_region
        %s490 = ssub.s32 %s29, 1
        // Predicated region
        $region73: #{tpu_custom_call.1} parent=71 // pred_check
          %p491 = pneg %p137
        $region74: #{tpu_custom_call.1} parent=71 // pred_check_branch
          %493 = sbr.rel (%p491) target = $region76
        $region75: #{tpu_custom_call.1} parent=71 // pred_region
          %495 = dma.done [#allocation5], 256
        $region76: #{tpu_custom_call.1} parent=71 // pred_fallthru
          _
        // Predicated region
        $region77: #{tpu_custom_call.1} parent=71 // pred_check
          %p496 = pneg %p158
        $region78: #{tpu_custom_call.1} parent=71 // pred_check_branch
          %498 = sbr.rel (%p496) target = $region80
        $region79: #{tpu_custom_call.1} parent=71 // pred_region
          %500 = dma.done [#allocation8], 256
        $region80: #{tpu_custom_call.1} parent=71 // pred_fallthru
          _
        // Predicated region
        $region81: #{tpu_custom_call.1} parent=71 // pred_check
          %p501 = pneg %p221
        $region82: #{tpu_custom_call.1} parent=71 // pred_check_branch
          %503 = sbr.rel (%p501) target = $region84
        $region83: #{tpu_custom_call.1} parent=71 // pred_region
          %505 = dma.done [#allocation8], 256
        $region84: #{tpu_custom_call.1} parent=71 // pred_fallthru
          _
        %p506 = scmp.lt.s32.totalorder %s38, 1
        %s507 = scalar_select %p506, %s38, 1
        %p508 = scmp.lt.s32.totalorder %s39, 0
        %s509 = scalar_select %p508, %s39, 0
        %s510 = sadd.s32 %s509, %s507
        %s511 = smul.addr %s510, 8
        %s512 = scalar_lea.vmem %s0, %s511
        %p513 = pneg %p69
        %p514 = pneg %p66
        %p515 = scmp.lt.s32.totalorder %s38, 1
        %s516 = scalar_select %p515, %s38, 1
        %s517 = smul.addr %s516, 8
        %s518 = scalar_lea.vmem %s1, %s517
        %p519 = pneg %p95
        %p520 = pneg %p92
        %p521 = pneg %p116
        %p522 = pneg %p113
        %p523 = pneg %p137
        %p524 = pneg %p134
        %p525 = pneg %p158
        %p526 = pneg %p155
        %p527 = pneg %p179
        %p528 = pneg %p176
        %p529 = pneg %p200
        %p530 = pneg %p197
        %p531 = pneg %p221
        %p532 = pneg %p218
        %p533 = pneg %p242
        %p534 = pneg %p239
        %p535 = pneg %p263
        %p536 = pneg %p260
        %p537 = pneg %p284
        %p538 = pneg %p281
        %p539 = pneg %p305
        %p540 = pneg %p302
        %p541 = pneg %p326
        %p542 = pneg %p323
        %p543 = pneg %p354
        %p544 = pneg %p351
        %s545 = sand.u32 %s341, 1
        %s546 = scalar_lea.sflag [#allocation6], %s545
        %s547 = sand.u32 %s341, 1
        %s548 = smul.addr %s547, 8
        %s549 = scalar_lea.vmem [#allocation10], %s548
        %p550 = pneg %p382
        %p551 = pneg %p379
        %s552 = sand.u32 %s369, 1
        %s553 = scalar_lea.sflag [#allocation12], %s552
        %s554 = sand.u32 %s369, 1
        %s555 = smul.addr %s554, 32
        %s556 = scalar_lea.vmem [#allocation11], %s555
        %p557 = scmp.lt.s32.totalorder %s38, 1
        %s558 = scalar_select %p557, %s38, 1
        %p559 = scmp.lt.s32.totalorder %s39, 0
        %s560 = scalar_select %p559, %s39, 0
        %s561 = sadd.s32 %s560, %s558
        %s562 = smul.addr %s561, 8
        %s563 = scalar_lea.vmem %s0, %s562
        %p564 = scmp.lt.s32.totalorder %s38, 1
        %s565 = scalar_select %p564, %s38, 1
        %s566 = smul.addr %s565, 8
        %s567 = scalar_lea.vmem %s1, %s566
        %p569 = scmp.eq.s32.totalorder %s39, 0
        // Predicated region
        $region85: #{tpu_custom_call.1} parent=71 // pred_check
          %p570 = pneg %p569
        $region86: #{tpu_custom_call.1} parent=71 // pred_check_branch
          %572 = sbr.rel (%p570) target = $region88
        $region87: #{tpu_custom_call.1} parent=71 // pred_region
          %v573 = vld [vmem:[%s567] sm:$0xff]
          %v574 = vpack.c.bf16 %v573, %v573
          %v575 = vld [vmem:[#allocation4] sm:$0xf]
          %v576 = vld [vmem:[#allocation4 + $0x4] sm:$0xf]
          %v577 = vld [vmem:[#allocation4 + $0x8] sm:$0xf]
          %v578 = vld [vmem:[#allocation4 + $0xc] sm:$0xf]
          %v583 = vunpack.c.l.b16 %v575
          %v584 = vunpack.c.l.b16 %v576
          %v585 = vunpack.c.l.b16 %v577
          %v586 = vunpack.c.l.b16 %v578
          %v587 = vpack.c.b16 %v584, %v583
          %v588 = vpack.c.b16 %v586, %v585
          %vm591 = vcmask 261120
          %v593 = vsel %vm591, %v574, 0
          %595 = vmatpush.bf16.msra.mxu0 0
          %596 = vmatpush.bf16.msra.mxu0 0
          %597 = vmatpush.bf16.msra.mxu0 0
          %598 = vmatpush.bf16.msra.mxu0 0
          %599 = vmatpush.bf16.msra.mxu0 0
          %600 = vmatpush.bf16.msra.mxu0 0
          %601 = vmatpush.bf16.msra.mxu0 %v588
          %602 = vmatpush.bf16.msra.mxu0 %v587
          %603 = vmatmul.bf16.gmra.mxu0 %v593
          %v604 = vpop.f32.mrf.mxu0
          %v605 = vadd.f32 0.0, %v604
          %v606 = vpop.f32.mrf.mxu0
          %607 = vdwg.mxu0
          %v608 = vpack.c.bf16 %v605, %v605
          %vm609 = vcmask 257024
          %610 = vst.msk [vmem:[#allocation2] sm:$0xf] %vm609, %v608
          %612 = vrot.lane.b32.xlu0 %v608, 96
          %v613 = vpop.permute.xlu0 %612
          %615 = vst.msk [vmem:[#allocation3] sm:$0xf] %vm609, %v613
        $region88: #{tpu_custom_call.1} parent=71 // pred_fallthru
          _
        %v616 = vld [vmem:[%s563] sm:$0xff]
        %v617 = vpack.c.bf16 %v616, %v616
        %v618 = vld [vmem:[%s2] sm:$0xf]
        %v619 = vld [vmem:[%s2 + $0x4] sm:$0xf]
        %v620 = vld [vmem:[%s2 + $0x8] sm:$0xf]
        %v621 = vld [vmem:[%s2 + $0xc] sm:$0xf]
        %v626 = vunpack.c.l.b16 %v618
        %v627 = vunpack.c.l.b16 %v619
        %v628 = vunpack.c.l.b16 %v620
        %v629 = vunpack.c.l.b16 %v621
        %v630 = vpack.c.b16 %v627, %v626
        %v631 = vpack.c.b16 %v629, %v628
        %vm634 = vcmask 261120
        %v636 = vsel %vm634, %v617, 0
        %638 = vmatpush.bf16.msra.mxu0 0
        %639 = vmatpush.bf16.msra.mxu0 0
        %640 = vmatpush.bf16.msra.mxu0 0
        %641 = vmatpush.bf16.msra.mxu0 0
        %642 = vmatpush.bf16.msra.mxu0 0
        %643 = vmatpush.bf16.msra.mxu0 0
        %644 = vmatpush.bf16.msra.mxu0 %v631
        %645 = vmatpush.bf16.msra.mxu0 %v630
        %646 = vmatmul.bf16.gmra.mxu0 %v636
        %v647 = vpop.f32.mrf.mxu0
        %v648 = vadd.f32 0.0, %v647
        %v649 = vpop.f32.mrf.mxu0
        %650 = vdwg.mxu0
        %v651 = vmul.f32 %v648, 0.35355338
        %v652 = vpack.c.bf16 %v651, %v651
        %654 = vrot.lane.b32.xlu0 %v652, 120
        %v655 = vpop.permute.xlu0 %654
        %656 = vrot.lane.b32.xlu0 %v652, 112
        %v657 = vpop.permute.xlu0 %656
        %658 = vrot.lane.b32.xlu0 %v652, 104
        %v659 = vpop.permute.xlu0 %658
        %v662 = vpack.i.b16 %v655, %v652
        %v663 = vshrl.u32 %v652, 16
        %v664 = vshrl.u32 %v655, 16
        %v665 = vpack.i.b16 %v664, %v663
        %v668 = vpack.i.b16 %v659, %v657
        %v669 = vshrl.u32 %v657, 16
        %v670 = vshrl.u32 %v659, 16
        %v671 = vpack.i.b16 %v670, %v669
        %v674 = vunpack.c.l.s4 1983009808
        %v675 = vunpack.c.0.s8 %v674
        %v676 = vperm.slane %v662, %v675
        %v679 = vunpack.c.l.s4 1983009808
        %v680 = vunpack.c.0.s8 %v679
        %v681 = vperm.slane %v668, %v680
        %v682 = vrot.slane %v681, 4
        %vm683 = vcmask 1047556
        %v684 = vsel %vm683, %v682, %v676
        %v685 = vrot.slane %v676, 4
        %v686 = vsel %vm683, %v681, %v685
        %v688 = vunpack.c.l.s4 1934713408
        %v689 = vunpack.c.0.s8 %v688
        %v690 = vperm.slane %v684, %v689
        %v692 = vunpack.c.l.s4 1934713408
        %v693 = vunpack.c.0.s8 %v692
        %v694 = vperm.slane %v686, %v693
        %v695 = vrot.slane %v690, 4
        %v696 = vsel %vm683, 0, %v695
        %v697 = vrot.slane %v694, 4
        %v698 = vsel %vm683, 0, %v697
        %v701 = vunpack.c.l.s4 1983009808
        %v702 = vunpack.c.0.s8 %v701
        %v703 = vperm.slane %v665, %v702
        %v706 = vunpack.c.l.s4 1983009808
        %v707 = vunpack.c.0.s8 %v706
        %v708 = vperm.slane %v671, %v707
        %v709 = vrot.slane %v708, 4
        %v710 = vsel %vm683, %v709, %v703
        %v711 = vrot.slane %v703, 4
        %v712 = vsel %vm683, %v708, %v711
        %v714 = vunpack.c.l.s4 1934713408
        %v715 = vunpack.c.0.s8 %v714
        %v716 = vperm.slane %v710, %v715
        %v718 = vunpack.c.l.s4 1934713408
        %v719 = vunpack.c.0.s8 %v718
        %v720 = vperm.slane %v712, %v719
        %v721 = vrot.slane %v716, 4
        %v722 = vsel %vm683, 0, %v721
        %v723 = vrot.slane %v720, 4
        %v724 = vsel %vm683, 0, %v723
        %v725 = vsel %vm683, %v697, %v690
        %v727 = vunpack.c.l.s4 1983009808
        %v728 = vunpack.c.0.s8 %v727
        %v729 = vperm.slane %v725, %v728
        %v730 = vrot.slane %v698, 4
        %v731 = vsel %vm683, %v730, %v696
        %v733 = vunpack.c.l.s4 1983009808
        %v734 = vunpack.c.0.s8 %v733
        %v735 = vperm.slane %v731, %v734
        %v736 = vrot.slane %v735, 4
        %v737 = vsel %vm683, %v736, %v729
        %v739 = vunpack.c.l.s4 1934713408
        %v740 = vunpack.c.0.s8 %v739
        %v741 = vperm.slane %v737, %v740
        %v742 = vrot.slane %v741, 4
        %v743 = vsel %vm683, 0, %v742
        %v744 = vsel %vm683, %v723, %v716
        %v746 = vunpack.c.l.s4 1983009808
        %v747 = vunpack.c.0.s8 %v746
        %v748 = vperm.slane %v744, %v747
        %v749 = vrot.slane %v724, 4
        %v750 = vsel %vm683, %v749, %v722
        %v752 = vunpack.c.l.s4 1983009808
        %v753 = vunpack.c.0.s8 %v752
        %v754 = vperm.slane %v750, %v753
        %v755 = vrot.slane %v754, 4
        %v756 = vsel %vm683, %v755, %v748
        %v758 = vunpack.c.l.s4 1934713408
        %v759 = vunpack.c.0.s8 %v758
        %v760 = vperm.slane %v756, %v759
        %v761 = vrot.slane %v760, 4
        %v762 = vsel %vm683, 0, %v761
        %v765 = vpack.i.b16 %v760, %v741
        %v766 = vshrl.u32 %v741, 16
        %v767 = vshrl.u32 %v760, 16
        %v768 = vpack.i.b16 %v767, %v766
        %v771 = vpack.i.b16 %v762, %v743
        %v772 = vshrl.u32 %v743, 16
        %v773 = vshrl.u32 %v762, 16
        %v774 = vpack.i.b16 %v773, %v772
        %v775 = vld [vmem:[#allocation2] sm:$0xf]
        %777 = vrot.lane.b32.xlu0 %v775, 120
        %v778 = vpop.permute.xlu0 %777
        %779 = vrot.lane.b32.xlu0 %v775, 112
        %v780 = vpop.permute.xlu0 %779
        %781 = vrot.lane.b32.xlu0 %v775, 104
        %v782 = vpop.permute.xlu0 %781
        %v785 = vpack.i.b16 %v778, %v775
        %v786 = vshrl.u32 %v775, 16
        %v787 = vshrl.u32 %v778, 16
        %v788 = vpack.i.b16 %v787, %v786
        %v791 = vpack.i.b16 %v782, %v780
        %v792 = vshrl.u32 %v780, 16
        %v793 = vshrl.u32 %v782, 16
        %v794 = vpack.i.b16 %v793, %v792
        %v797 = vunpack.c.l.s4 1983009808
        %v798 = vunpack.c.0.s8 %v797
        %v799 = vperm.slane %v785, %v798
        %v802 = vunpack.c.l.s4 1983009808
        %v803 = vunpack.c.0.s8 %v802
        %v804 = vperm.slane %v791, %v803
        %v805 = vrot.slane %v804, 4
        %v806 = vsel %vm683, %v805, %v799
        %v807 = vrot.slane %v799, 4
        %v808 = vsel %vm683, %v804, %v807
        %v810 = vunpack.c.l.s4 1934713408
        %v811 = vunpack.c.0.s8 %v810
        %v812 = vperm.slane %v806, %v811
        %v814 = vunpack.c.l.s4 1934713408
        %v815 = vunpack.c.0.s8 %v814
        %v816 = vperm.slane %v808, %v815
        %v817 = vrot.slane %v812, 4
        %v818 = vsel %vm683, 0, %v817
        %v819 = vrot.slane %v816, 4
        %v820 = vsel %vm683, 0, %v819
        %v823 = vunpack.c.l.s4 1983009808
        %v824 = vunpack.c.0.s8 %v823
        %v825 = vperm.slane %v788, %v824
        %v828 = vunpack.c.l.s4 1983009808
        %v829 = vunpack.c.0.s8 %v828
        %v830 = vperm.slane %v794, %v829
        %v831 = vrot.slane %v830, 4
        %v832 = vsel %vm683, %v831, %v825
        %v833 = vrot.slane %v825, 4
        %v834 = vsel %vm683, %v830, %v833
        %v836 = vunpack.c.l.s4 1934713408
        %v837 = vunpack.c.0.s8 %v836
        %v838 = vperm.slane %v832, %v837
        %v840 = vunpack.c.l.s4 1934713408
        %v841 = vunpack.c.0.s8 %v840
        %v842 = vperm.slane %v834, %v841
        %v843 = vrot.slane %v838, 4
        %v844 = vsel %vm683, 0, %v843
        %v845 = vrot.slane %v842, 4
        %v846 = vsel %vm683, 0, %v845
        %v847 = vsel %vm683, %v819, %v812
        %v849 = vunpack.c.l.s4 1983009808
        %v850 = vunpack.c.0.s8 %v849
        %v851 = vperm.slane %v847, %v850
        %v852 = vrot.slane %v820, 4
        %v853 = vsel %vm683, %v852, %v818
        %v855 = vunpack.c.l.s4 1983009808
        %v856 = vunpack.c.0.s8 %v855
        %v857 = vperm.slane %v853, %v856
        %v858 = vrot.slane %v857, 4
        %v859 = vsel %vm683, %v858, %v851
        %v861 = vunpack.c.l.s4 1934713408
        %v862 = vunpack.c.0.s8 %v861
        %v863 = vperm.slane %v859, %v862
        %v864 = vrot.slane %v863, 4
        %v865 = vsel %vm683, 0, %v864
        %v866 = vsel %vm683, %v845, %v838
        %v868 = vunpack.c.l.s4 1983009808
        %v869 = vunpack.c.0.s8 %v868
        %v870 = vperm.slane %v866, %v869
        %v871 = vrot.slane %v846, 4
        %v872 = vsel %vm683, %v871, %v844
        %v874 = vunpack.c.l.s4 1983009808
        %v875 = vunpack.c.0.s8 %v874
        %v876 = vperm.slane %v872, %v875
        %v877 = vrot.slane %v876, 4
        %v878 = vsel %vm683, %v877, %v870
        %v880 = vunpack.c.l.s4 1934713408
        %v881 = vunpack.c.0.s8 %v880
        %v882 = vperm.slane %v878, %v881
        %v883 = vrot.slane %v882, 4
        %v884 = vsel %vm683, 0, %v883
        %v887 = vpack.i.b16 %v882, %v863
        %v888 = vshrl.u32 %v863, 16
        %v889 = vshrl.u32 %v882, 16
        %v890 = vpack.i.b16 %v889, %v888
        %v893 = vpack.i.b16 %v884, %v865
        %v894 = vshrl.u32 %v865, 16
        %v895 = vshrl.u32 %v884, 16
        %v896 = vpack.i.b16 %v895, %v894
        %v897 = vld [vmem:[#allocation3] sm:$0xf]
        %899 = vrot.lane.b32.xlu0 %v897, 120
        %v900 = vpop.permute.xlu0 %899
        %901 = vrot.lane.b32.xlu0 %v897, 112
        %v902 = vpop.permute.xlu0 %901
        %903 = vrot.lane.b32.xlu0 %v897, 104
        %v904 = vpop.permute.xlu0 %903
        %v907 = vpack.i.b16 %v900, %v897
        %v908 = vshrl.u32 %v897, 16
        %v909 = vshrl.u32 %v900, 16
        %v910 = vpack.i.b16 %v909, %v908
        %v913 = vpack.i.b16 %v904, %v902
        %v914 = vshrl.u32 %v902, 16
        %v915 = vshrl.u32 %v904, 16
        %v916 = vpack.i.b16 %v915, %v914
        %v919 = vunpack.c.l.s4 1983009808
        %v920 = vunpack.c.0.s8 %v919
        %v921 = vperm.slane %v907, %v920
        %v924 = vunpack.c.l.s4 1983009808
        %v925 = vunpack.c.0.s8 %v924
        %v926 = vperm.slane %v913, %v925
        %v927 = vrot.slane %v926, 4
        %v928 = vsel %vm683, %v927, %v921
        %v929 = vrot.slane %v921, 4
        %v930 = vsel %vm683, %v926, %v929
        %v932 = vunpack.c.l.s4 1934713408
        %v933 = vunpack.c.0.s8 %v932
        %v934 = vperm.slane %v928, %v933
        %v936 = vunpack.c.l.s4 1934713408
        %v937 = vunpack.c.0.s8 %v936
        %v938 = vperm.slane %v930, %v937
        %v939 = vrot.slane %v934, 4
        %v940 = vsel %vm683, 0, %v939
        %v941 = vrot.slane %v938, 4
        %v942 = vsel %vm683, 0, %v941
        %v945 = vunpack.c.l.s4 1983009808
        %v946 = vunpack.c.0.s8 %v945
        %v947 = vperm.slane %v910, %v946
        %v950 = vunpack.c.l.s4 1983009808
        %v951 = vunpack.c.0.s8 %v950
        %v952 = vperm.slane %v916, %v951
        %v953 = vrot.slane %v952, 4
        %v954 = vsel %vm683, %v953, %v947
        %v955 = vrot.slane %v947, 4
        %v956 = vsel %vm683, %v952, %v955
        %v958 = vunpack.c.l.s4 1934713408
        %v959 = vunpack.c.0.s8 %v958
        %v960 = vperm.slane %v954, %v959
        %v962 = vunpack.c.l.s4 1934713408
        %v963 = vunpack.c.0.s8 %v962
        %v964 = vperm.slane %v956, %v963
        %v965 = vrot.slane %v960, 4
        %v966 = vsel %vm683, 0, %v965
        %v967 = vrot.slane %v964, 4
        %v968 = vsel %vm683, 0, %v967
        %v969 = vsel %vm683, %v941, %v934
        %v971 = vunpack.c.l.s4 1983009808
        %v972 = vunpack.c.0.s8 %v971
        %v973 = vperm.slane %v969, %v972
        %v974 = vrot.slane %v942, 4
        %v975 = vsel %vm683, %v974, %v940
        %v977 = vunpack.c.l.s4 1983009808
        %v978 = vunpack.c.0.s8 %v977
        %v979 = vperm.slane %v975, %v978
        %v980 = vrot.slane %v979, 4
        %v981 = vsel %vm683, %v980, %v973
        %v983 = vunpack.c.l.s4 1934713408
        %v984 = vunpack.c.0.s8 %v983
        %v985 = vperm.slane %v981, %v984
        %v986 = vrot.slane %v985, 4
        %v987 = vsel %vm683, 0, %v986
        %v988 = vsel %vm683, %v967, %v960
        %v990 = vunpack.c.l.s4 1983009808
        %v991 = vunpack.c.0.s8 %v990
        %v992 = vperm.slane %v988, %v991
        %v993 = vrot.slane %v968, 4
        %v994 = vsel %vm683, %v993, %v966
        %v996 = vunpack.c.l.s4 1983009808
        %v997 = vunpack.c.0.s8 %v996
        %v998 = vperm.slane %v994, %v997
        %v999 = vrot.slane %v998, 4
        %v1000 = vsel %vm683, %v999, %v992
        %v1002 = vunpack.c.l.s4 1934713408
        %v1003 = vunpack.c.0.s8 %v1002
        %v1004 = vperm.slane %v1000, %v1003
        %v1005 = vrot.slane %v1004, 4
        %v1006 = vsel %vm683, 0, %v1005
        %v1009 = vpack.i.b16 %v1004, %v985
        %v1010 = vshrl.u32 %v985, 16
        %v1011 = vshrl.u32 %v1004, 16
        %v1012 = vpack.i.b16 %v1011, %v1010
        %v1015 = vpack.i.b16 %v1006, %v987
        %v1016 = vshrl.u32 %v987, 16
        %v1017 = vshrl.u32 %v1006, 16
        %v1018 = vpack.i.b16 %v1017, %v1016
        %vm1019 = vcmask 64512
        %v1021 = vsel %vm1019, %v765, 0
        %v1024 = vsel %vm1019, %v887, 0
        %1026 = vmatpush.bf16.xpose.msra.mxu0 0
        %1027 = vmatpush.bf16.xpose.msra.mxu0 0
        %1028 = vmatpush.bf16.xpose.msra.mxu0 0
        %1029 = vmatpush.bf16.xpose.msra.mxu0 0
        %1030 = vmatpush.bf16.xpose.msra.mxu0 0
        %1031 = vmatpush.bf16.xpose.msra.mxu0 0
        %1032 = vmatpush.bf16.xpose.msra.mxu0 0
        %1033 = vmatpush.bf16.xpose.msra.mxu0 %v1024
        %1034 = vmatmul.bf16.gmra.mxu0 %v1021
        %v1035 = vpop.f32.mrf.mxu0
        %v1036 = vadd.f32 0.0, %v1035
        %v1037 = vpop.f32.mrf.mxu0
        %1038 = vdwg.mxu0
        %v1040 = vsel %vm1019, %v768, 0
        %v1043 = vsel %vm1019, %v890, 0
        %1045 = vmatpush.bf16.xpose.msra.mxu0 0
        %1046 = vmatpush.bf16.xpose.msra.mxu0 0
        %1047 = vmatpush.bf16.xpose.msra.mxu0 0
        %1048 = vmatpush.bf16.xpose.msra.mxu0 0
        %1049 = vmatpush.bf16.xpose.msra.mxu0 0
        %1050 = vmatpush.bf16.xpose.msra.mxu0 0
        %1051 = vmatpush.bf16.xpose.msra.mxu0 0
        %1052 = vmatpush.bf16.xpose.msra.mxu0 %v1043
        %1053 = vmatmul.bf16.gmra.mxu0 %v1040
        %v1054 = vpop.f32.mrf.mxu0
        %v1055 = vadd.f32 0.0, %v1054
        %v1056 = vpop.f32.mrf.mxu0
        %1057 = vdwg.mxu0
        %v1059 = vsel %vm1019, %v771, 0
        %v1062 = vsel %vm1019, %v893, 0
        %1064 = vmatpush.bf16.xpose.msra.mxu0 0
        %1065 = vmatpush.bf16.xpose.msra.mxu0 0
        %1066 = vmatpush.bf16.xpose.msra.mxu0 0
        %1067 = vmatpush.bf16.xpose.msra.mxu0 0
        %1068 = vmatpush.bf16.xpose.msra.mxu0 0
        %1069 = vmatpush.bf16.xpose.msra.mxu0 0
        %1070 = vmatpush.bf16.xpose.msra.mxu0 0
        %1071 = vmatpush.bf16.xpose.msra.mxu0 %v1062
        %1072 = vmatmul.bf16.gmra.mxu0 %v1059
        %v1073 = vpop.f32.mrf.mxu0
        %v1074 = vadd.f32 0.0, %v1073
        %v1075 = vpop.f32.mrf.mxu0
        %1076 = vdwg.mxu0
        %v1078 = vsel %vm1019, %v774, 0
        %v1081 = vsel %vm1019, %v896, 0
        %1083 = vmatpush.bf16.xpose.msra.mxu0 0
        %1084 = vmatpush.bf16.xpose.msra.mxu0 0
        %1085 = vmatpush.bf16.xpose.msra.mxu0 0
        %1086 = vmatpush.bf16.xpose.msra.mxu0 0
        %1087 = vmatpush.bf16.xpose.msra.mxu0 0
        %1088 = vmatpush.bf16.xpose.msra.mxu0 0
        %1089 = vmatpush.bf16.xpose.msra.mxu0 0
        %1090 = vmatpush.bf16.xpose.msra.mxu0 %v1081
        %1091 = vmatmul.bf16.gmra.mxu0 %v1078
        %v1092 = vpop.f32.mrf.mxu0
        %v1093 = vadd.f32 0.0, %v1092
        %v1094 = vpop.f32.mrf.mxu0
        %1095 = vdwg.mxu0
        %v1096 = vsel %vm1019, %v1036, -inf
        %1097 = vmax.xlane.f32.xlu0 %v1096
        %v1098 = vpop.xlane.xlu0 %1097
        %v1099 = vsel %vm1019, %v1055, -inf
        %1100 = vmax.xlane.f32.xlu0 %v1099
        %v1101 = vpop.xlane.xlu0 %1100
        %v1102 = vsel %vm1019, %v1074, -inf
        %1103 = vmax.xlane.f32.xlu0 %v1102
        %v1104 = vpop.xlane.xlu0 %1103
        %v1105 = vsel %vm1019, %v1093, -inf
        %1106 = vmax.xlane.f32.xlu0 %v1105
        %v1107 = vpop.xlane.xlu0 %1106
        %v1108 = vsub.f32 %v1036, %v1098
        %v1109 = vsub.f32 %v1055, %v1101
        %v1110 = vsub.f32 %v1074, %v1104
        %v1111 = vsub.f32 %v1093, %v1107
        %v1112 = vmul.f32 %v1108, 1.442695
        %v1113 = vpow.pop %v1112
        %v1114 = vmul.f32 %v1109, 1.442695
        %v1115 = vpow.pop %v1114
        %v1116 = vmul.f32 %v1110, 1.442695
        %v1117 = vpow.pop %v1116
        %v1118 = vmul.f32 %v1111, 1.442695
        %v1119 = vpow.pop %v1118
        %v1120 = vsel %vm1019, %v1113, 0.0
        %1121 = vadd.xlane.f32.xlu0 %v1120
        %v1122 = vpop.xlane.xlu0 %1121
        %v1123 = vsel %vm1019, %v1115, 0.0
        %1124 = vadd.xlane.f32.xlu0 %v1123
        %v1125 = vpop.xlane.xlu0 %1124
        %v1126 = vsel %vm1019, %v1117, 0.0
        %1127 = vadd.xlane.f32.xlu0 %v1126
        %v1128 = vpop.xlane.xlu0 %1127
        %v1129 = vsel %vm1019, %v1119, 0.0
        %1130 = vadd.xlane.f32.xlu0 %v1129
        %v1131 = vpop.xlane.xlu0 %1130
        %v1132 = vrcp.pop %v1122
        %v1133 = vrcp.pop %v1125
        %v1134 = vrcp.pop %v1128
        %v1135 = vrcp.pop %v1131
        %v1136 = vmul.f32 %v1113, %v1132
        %v1137 = vmul.f32 %v1115, %v1133
        %v1138 = vmul.f32 %v1117, %v1134
        %v1139 = vmul.f32 %v1119, %v1135
        %1140 = vst.msk [vmem:[%s556] sm:$0xff] %vm1019, %v1136
        %1141 = vst.msk [vmem:[%s556 + $0x8] sm:$0xff] %vm1019, %v1137
        %1142 = vst.msk [vmem:[%s556 + $0x10] sm:$0xff] %vm1019, %v1138
        %1143 = vst.msk [vmem:[%s556 + $0x18] sm:$0xff] %vm1019, %v1139
        %v1144 = vpack.c.bf16 %v1136, %v1136
        %v1145 = vpack.c.bf16 %v1137, %v1137
        %v1146 = vpack.c.bf16 %v1138, %v1138
        %v1147 = vpack.c.bf16 %v1139, %v1139
        %v1149 = vsel %vm1019, %v1144, 0
        %vm1151 = vcmask 1043456
        %v1153 = vsel %vm1151, %v1009, 0
        %1155 = vmatpush.bf16.msra.mxu0 0
        %1156 = vmatpush.bf16.msra.mxu0 0
        %1157 = vmatpush.bf16.msra.mxu0 0
        %1158 = vmatpush.bf16.msra.mxu0 0
        %1159 = vmatpush.bf16.msra.mxu0 0
        %1160 = vmatpush.bf16.msra.mxu0 0
        %1161 = vmatpush.bf16.msra.mxu0 0
        %1162 = vmatpush.bf16.msra.mxu0 %v1153
        %1163 = vmatmul.bf16.gmra.mxu0 %v1149
        %v1164 = vpop.f32.mrf.mxu0
        %v1165 = vadd.f32 0.0, %v1164
        %v1166 = vpop.f32.mrf.mxu0
        %1167 = vdwg.mxu0
        %v1169 = vsel %vm1019, %v1145, 0
        %v1172 = vsel %vm1151, %v1012, 0
        %1174 = vmatpush.bf16.msra.mxu0 0
        %1175 = vmatpush.bf16.msra.mxu0 0
        %1176 = vmatpush.bf16.msra.mxu0 0
        %1177 = vmatpush.bf16.msra.mxu0 0
        %1178 = vmatpush.bf16.msra.mxu0 0
        %1179 = vmatpush.bf16.msra.mxu0 0
        %1180 = vmatpush.bf16.msra.mxu0 0
        %1181 = vmatpush.bf16.msra.mxu0 %v1172
        %1182 = vmatmul.bf16.gmra.mxu0 %v1169
        %v1183 = vpop.f32.mrf.mxu0
        %v1184 = vadd.f32 0.0, %v1183
        %v1185 = vpop.f32.mrf.mxu0
        %1186 = vdwg.mxu0
        %v1188 = vsel %vm1019, %v1146, 0
        %v1191 = vsel %vm1151, %v1015, 0
        %1193 = vmatpush.bf16.msra.mxu0 0
        %1194 = vmatpush.bf16.msra.mxu0 0
        %1195 = vmatpush.bf16.msra.mxu0 0
        %1196 = vmatpush.bf16.msra.mxu0 0
        %1197 = vmatpush.bf16.msra.mxu0 0
        %1198 = vmatpush.bf16.msra.mxu0 0
        %1199 = vmatpush.bf16.msra.mxu0 0
        %1200 = vmatpush.bf16.msra.mxu0 %v1191
        %1201 = vmatmul.bf16.gmra.mxu0 %v1188
        %v1202 = vpop.f32.mrf.mxu0
        %v1203 = vadd.f32 0.0, %v1202
        %v1204 = vpop.f32.mrf.mxu0
        %1205 = vdwg.mxu0
        %v1207 = vsel %vm1019, %v1147, 0
        %v1210 = vsel %vm1151, %v1018, 0
        %1212 = vmatpush.bf16.msra.mxu0 0
        %1213 = vmatpush.bf16.msra.mxu0 0
        %1214 = vmatpush.bf16.msra.mxu0 0
        %1215 = vmatpush.bf16.msra.mxu0 0
        %1216 = vmatpush.bf16.msra.mxu0 0
        %1217 = vmatpush.bf16.msra.mxu0 0
        %1218 = vmatpush.bf16.msra.mxu0 0
        %1219 = vmatpush.bf16.msra.mxu0 %v1210
        %1220 = vmatmul.bf16.gmra.mxu0 %v1207
        %v1221 = vpop.f32.mrf.mxu0
        %v1222 = vadd.f32 0.0, %v1221
        %v1223 = vpop.f32.mrf.mxu0
        %1224 = vdwg.mxu0
        %v1225 = vrot.slane %v1203, 4
        %vm1226 = vcmask 1047556
        %v1227 = vsel %vm1226, %v1225, %v1165
        %v1228 = vrot.slane %v1165, 4
        %v1229 = vsel %vm1226, %v1203, %v1228
        %v1231 = vunpack.c.l.s4 1983009808
        %v1232 = vunpack.c.0.s8 %v1231
        %v1233 = vperm.slane %v1227, %v1232
        %v1235 = vunpack.c.l.s4 1983009808
        %v1236 = vunpack.c.0.s8 %v1235
        %v1237 = vperm.slane %v1229, %v1236
        %v1238 = vrot.slane %v1222, 4
        %v1239 = vsel %vm1226, %v1238, %v1184
        %v1240 = vrot.slane %v1184, 4
        %v1241 = vsel %vm1226, %v1222, %v1240
        %v1243 = vunpack.c.l.s4 1983009808
        %v1244 = vunpack.c.0.s8 %v1243
        %v1245 = vperm.slane %v1239, %v1244
        %v1247 = vunpack.c.l.s4 1983009808
        %v1248 = vunpack.c.0.s8 %v1247
        %v1249 = vperm.slane %v1241, %v1248
        %v1250 = vrot.slane %v1245, 4
        %v1251 = vsel %vm1226, %v1250, %v1233
        %v1252 = vrot.slane %v1233, 4
        %v1253 = vsel %vm1226, %v1245, %v1252
        %v1255 = vunpack.c.l.s4 1934713408
        %v1256 = vunpack.c.0.s8 %v1255
        %v1257 = vperm.slane %v1251, %v1256
        %v1259 = vunpack.c.l.s4 1934713408
        %v1260 = vunpack.c.0.s8 %v1259
        %v1261 = vperm.slane %v1253, %v1260
        %v1262 = vrot.slane %v1249, 4
        %v1263 = vsel %vm1226, %v1262, %v1237
        %v1264 = vrot.slane %v1237, 4
        %v1265 = vsel %vm1226, %v1249, %v1264
        %v1267 = vunpack.c.l.s4 1934713408
        %v1268 = vunpack.c.0.s8 %v1267
        %v1269 = vperm.slane %v1263, %v1268
        %v1271 = vunpack.c.l.s4 1934713408
        %v1272 = vunpack.c.0.s8 %v1271
        %v1273 = vperm.slane %v1265, %v1272
        %v1274 = vrot.slane %v1257, 4
        %v1275 = vsel %vm1226, 0.0, %v1274
        %v1276 = vrot.slane %v1261, 4
        %v1277 = vsel %vm1226, 0.0, %v1276
        %v1278 = vrot.slane %v1269, 4
        %v1279 = vsel %vm1226, 0.0, %v1278
        %v1280 = vrot.slane %v1273, 4
        %v1281 = vsel %vm1226, 0.0, %v1280
        %v1282 = vsel %vm1226, %v1276, %v1257
        %v1284 = vunpack.c.l.s4 1983009808
        %v1285 = vunpack.c.0.s8 %v1284
        %v1286 = vperm.slane %v1282, %v1285
        %v1287 = vrot.slane %v1277, 4
        %v1288 = vsel %vm1226, %v1287, %v1275
        %v1290 = vunpack.c.l.s4 1983009808
        %v1291 = vunpack.c.0.s8 %v1290
        %v1292 = vperm.slane %v1288, %v1291
        %v1293 = vsel %vm1226, %v1280, %v1269
        %v1295 = vunpack.c.l.s4 1983009808
        %v1296 = vunpack.c.0.s8 %v1295
        %v1297 = vperm.slane %v1293, %v1296
        %v1298 = vrot.slane %v1281, 4
        %v1299 = vsel %vm1226, %v1298, %v1279
        %v1301 = vunpack.c.l.s4 1983009808
        %v1302 = vunpack.c.0.s8 %v1301
        %v1303 = vperm.slane %v1299, %v1302
        %v1304 = vrot.slane %v1292, 4
        %v1305 = vsel %vm1226, %v1304, %v1286
        %v1306 = vrot.slane %v1286, 4
        %v1307 = vsel %vm1226, %v1292, %v1306
        %v1309 = vunpack.c.l.s4 1934713408
        %v1310 = vunpack.c.0.s8 %v1309
        %v1311 = vperm.slane %v1305, %v1310
        %v1313 = vunpack.c.l.s4 1934713408
        %v1314 = vunpack.c.0.s8 %v1313
        %v1315 = vperm.slane %v1307, %v1314
        %v1316 = vrot.slane %v1303, 4
        %v1317 = vsel %vm1226, %v1316, %v1297
        %v1318 = vrot.slane %v1297, 4
        %v1319 = vsel %vm1226, %v1303, %v1318
        %v1321 = vunpack.c.l.s4 1934713408
        %v1322 = vunpack.c.0.s8 %v1321
        %v1323 = vperm.slane %v1317, %v1322
        %v1325 = vunpack.c.l.s4 1934713408
        %v1326 = vunpack.c.0.s8 %v1325
        %v1327 = vperm.slane %v1319, %v1326
        %v1328 = vrot.slane %v1323, 4
        %v1329 = vsel %vm1226, %v1328, %v1311
        %v1330 = vrot.slane %v1311, 4
        %v1331 = vsel %vm1226, %v1323, %v1330
        %v1332 = vrot.slane %v1327, 4
        %v1333 = vsel %vm1226, %v1332, %v1315
        %v1334 = vrot.slane %v1315, 4
        %v1335 = vsel %vm1226, %v1327, %v1334
        %1337 = vrot.lane.b32.xlu0 %v1331, 8
        %v1338 = vpop.permute.xlu0 %1337
        %1341 = vrot.lane.b32.xlu0 %v1333, 16
        %v1342 = vpop.permute.xlu0 %1341
        %1345 = vrot.lane.b32.xlu0 %v1335, 24
        %v1346 = vpop.permute.xlu0 %1345
        %v1348 = vsel %vm1019, %v1329, %v1338
        %vm1349 = vcmask 130048
        %v1350 = vsel %vm1349, %v1348, %v1342
        %vm1351 = vcmask 195584
        %v1352 = vsel %vm1351, %v1350, %v1346
        %v1353 = vpack.c.bf16 %v1352, %v1352
        %v1354 = vld [vmem:[#allocation7] sm:$0xf]
        %v1355 = vld [vmem:[#allocation7 + $0x4] sm:$0xf]
        %v1356 = vld [vmem:[#allocation7 + $0x8] sm:$0xf]
        %v1357 = vld [vmem:[#allocation7 + $0xc] sm:$0xf]
        %v1362 = vunpack.c.l.b16 %v1354
        %v1363 = vunpack.c.l.b16 %v1355
        %v1364 = vunpack.c.l.b16 %v1356
        %v1365 = vunpack.c.l.b16 %v1357
        %v1366 = vpack.c.b16 %v1363, %v1362
        %v1367 = vpack.c.b16 %v1365, %v1364
        %v1371 = vsel %vm634, %v1353, 0
        %1373 = vmatpush.bf16.msra.mxu0 0
        %1374 = vmatpush.bf16.msra.mxu0 0
        %1375 = vmatpush.bf16.msra.mxu0 0
        %1376 = vmatpush.bf16.msra.mxu0 0
        %1377 = vmatpush.bf16.msra.mxu0 0
        %1378 = vmatpush.bf16.msra.mxu0 0
        %1379 = vmatpush.bf16.msra.mxu0 %v1367
        %1380 = vmatpush.bf16.msra.mxu0 %v1366
        %1381 = vmatmul.bf16.gmra.mxu0 %v1371
        %v1382 = vpop.f32.mrf.mxu0
        %v1383 = vadd.f32 0.0, %v1382
        %v1384 = vpop.f32.mrf.mxu0
        %1385 = vdwg.mxu0
        %v1386 = vadd.f32 %v616, %v1383
        %v1387 = vld [vmem:[%s5] sm:$0x1]
        %v1388 = vld [vmem:[%s6] sm:$0x1]
        %v1389 = vsel %vm634, %v1386, 0.0
        %1390 = vadd.xlane.f32.xlu0 %v1389
        %v1391 = vpop.xlane.xlu0 %1390
        %v1392 = vrcp.pop 32.0
        %v1393 = vmul.f32 32.0, %v1392
        %v1394 = vsub.f32 1.0, %v1393
        %v1395 = vmul.f32 %v1392, %v1394
        %v1396 = vadd.f32 %v1392, %v1395
        %vm1397 = vweird.f32 %v1392
        %v1398 = vsel %vm1397, %v1392, %v1396
        %v1399 = vmul.f32 %v1391, %v1398
        %v1400 = vsub.f32 %v1386, %v1399
        %v1401 = vmul.f32 %v1400, %v1400
        %v1402 = vsel %vm634, %v1401, 0.0
        %1403 = vadd.xlane.f32.xlu0 %v1402
        %v1404 = vpop.xlane.xlu0 %1403
        %v1405 = vmul.f32 %v1404, %v1398
        %v1406 = vadd.f32 %v1405, 1e-05
        %v1407 = vrsqrt.pop %v1406
        %v1408 = vmul.f32 %v1407, %v1406
        %v1409 = vmul.f32 %v1408, %v1407
        %v1410 = vmul.f32 0.5, %v1409
        %v1411 = vsub.f32 1.5, %v1410
        %v1412 = vmul.f32 %v1407, %v1411
        %vm1413 = vweird.f32 %v1406
        %vm1414 = vweird.f32 %v1407
        %vm1415 = vmor %vm1413, %vm1414
        %v1416 = vsel %vm1415, %v1407, %v1412
        %v1417 = vmul.f32 %v1400, %v1416
        %v1419 = vperm.slane %v1387, 0
        %v1421 = vmul.f32 %v1417, %v1419
        %v1423 = vperm.slane %v1388, 0
        %v1425 = vadd.f32 %v1421, %v1423
        %v1426 = vpack.c.bf16 %v1425, %v1425
        %v1427 = vld [vmem:[#allocation9] sm:$0xf]
        %v1428 = vld [vmem:[#allocation9 + $0x4] sm:$0xf]
        %v1429 = vld [vmem:[#allocation9 + $0x8] sm:$0xf]
        %v1430 = vld [vmem:[#allocation9 + $0xc] sm:$0xf]
        %v1431 = vld [vmem:[%s8] sm:$0x1]
        %v1433 = vperm.slane %v1431, 0
        %v1439 = vunpack.c.l.b16 %v1427
        %v1440 = vunpack.c.l.b16 %v1428
        %v1441 = vunpack.c.l.b16 %v1429
        %v1442 = vunpack.c.l.b16 %v1430
        %v1443 = vpack.c.b16 %v1440, %v1439
        %v1444 = vpack.c.b16 %v1442, %v1441
        %v1448 = vsel %vm634, %v1426, 0
        %1450 = vmatpush.bf16.msra.mxu0 0
        %1451 = vmatpush.bf16.msra.mxu0 0
        %1452 = vmatpush.bf16.msra.mxu0 0
        %1453 = vmatpush.bf16.msra.mxu0 0
        %1454 = vmatpush.bf16.msra.mxu0 0
        %1455 = vmatpush.bf16.msra.mxu0 0
        %1456 = vmatpush.bf16.msra.mxu0 %v1444
        %1457 = vmatpush.bf16.msra.mxu0 %v1443
        %1458 = vmatmul.bf16.gmra.mxu0 %v1448
        %v1459 = vpop.f32.mrf.mxu0
        %v1460 = vadd.f32 %v1433, %v1459
        %v1461 = vpop.f32.mrf.mxu0
        %1462 = vdwg.mxu0
        %v1463 = vmax.f32 %v1460, 0.0
        %v1464 = vpack.c.bf16 %v1463, %v1463
        %v1465 = vld [vmem:[%s9] sm:$0xf]
        %v1466 = vld [vmem:[%s9 + $0x4] sm:$0xf]
        %v1467 = vld [vmem:[%s9 + $0x8] sm:$0xf]
        %v1468 = vld [vmem:[%s9 + $0xc] sm:$0xf]
        %v1469 = vld [vmem:[%s9 + $0x10] sm:$0xf]
        %v1470 = vld [vmem:[%s9 + $0x14] sm:$0xf]
        %v1471 = vld [vmem:[%s9 + $0x18] sm:$0xf]
        %v1472 = vld [vmem:[%s9 + $0x1c] sm:$0xf]
        %v1473 = vld [vmem:[%s10] sm:$0x1]
        %v1475 = vperm.slane %v1473, 0
        %v1485 = vunpack.c.l.b16 %v1465
        %v1486 = vunpack.c.l.b16 %v1466
        %v1487 = vunpack.c.l.b16 %v1467
        %v1488 = vunpack.c.l.b16 %v1468
        %v1489 = vunpack.c.l.b16 %v1469
        %v1490 = vunpack.c.l.b16 %v1470
        %v1491 = vunpack.c.l.b16 %v1471
        %v1492 = vunpack.c.l.b16 %v1472
        %v1493 = vpack.c.b16 %v1486, %v1485
        %v1494 = vpack.c.b16 %v1488, %v1487
        %v1495 = vpack.c.b16 %v1490, %v1489
        %v1496 = vpack.c.b16 %v1492, %v1491
        %vm1501 = vcmask 523264
        %v1503 = vsel %vm1501, %v1464, 0
        %1505 = vmatpush.bf16.msra.mxu0 0
        %1506 = vmatpush.bf16.msra.mxu0 0
        %1507 = vmatpush.bf16.msra.mxu0 0
        %1508 = vmatpush.bf16.msra.mxu0 0
        %1509 = vmatpush.bf16.msra.mxu0 %v1496
        %1510 = vmatpush.bf16.msra.mxu0 %v1495
        %1511 = vmatpush.bf16.msra.mxu0 %v1494
        %1512 = vmatpush.bf16.msra.mxu0 %v1493
        %1513 = vmatmul.bf16.gmra.mxu0 %v1503
        %v1514 = vpop.f32.mrf.mxu0
        %v1515 = vadd.f32 %v1475, %v1514
        %v1516 = vpop.f32.mrf.mxu0
        %1517 = vdwg.mxu0
        %v1518 = vadd.f32 %v1425, %v1515
        %v1519 = vld [vmem:[%s11] sm:$0x1]
        %v1520 = vld [vmem:[%s12] sm:$0x1]
        %v1521 = vsel %vm634, %v1518, 0.0
        %1522 = vadd.xlane.f32.xlu0 %v1521
        %v1523 = vpop.xlane.xlu0 %1522
        %v1524 = vmul.f32 %v1523, %v1398
        %v1525 = vsub.f32 %v1518, %v1524
        %v1526 = vmul.f32 %v1525, %v1525
        %v1527 = vsel %vm634, %v1526, 0.0
        %1528 = vadd.xlane.f32.xlu0 %v1527
        %v1529 = vpop.xlane.xlu0 %1528
        %v1530 = vmul.f32 %v1529, %v1398
        %v1531 = vadd.f32 %v1530, 1e-05
        %v1532 = vrsqrt.pop %v1531
        %v1533 = vmul.f32 %v1532, %v1531
        %v1534 = vmul.f32 %v1533, %v1532
        %v1535 = vmul.f32 0.5, %v1534
        %v1536 = vsub.f32 1.5, %v1535
        %v1537 = vmul.f32 %v1532, %v1536
        %vm1538 = vweird.f32 %v1531
        %vm1539 = vweird.f32 %v1532
        %vm1540 = vmor %vm1538, %vm1539
        %v1541 = vsel %vm1540, %v1532, %v1537
        %v1542 = vmul.f32 %v1525, %v1541
        %v1544 = vperm.slane %v1519, 0
        %v1546 = vmul.f32 %v1542, %v1544
        %v1548 = vperm.slane %v1520, 0
        %v1550 = vadd.f32 %v1546, %v1548
        %1551 = vst.msk [vmem:[%s549] sm:$0xff] %vm634, %v1550
        %s1552 = sand.u32 %s341, 1
        %s1553 = scalar_lea.sflag [#allocation6], %s1552
        %s1554 = sand.u32 %s341, 1
        %s1555 = smul.addr %s1554, 8
        %s1556 = scalar_lea.vmem [#allocation10], %s1555
        %s1557 = sand.u32 %s369, 1
        %s1558 = scalar_lea.sflag [#allocation12], %s1557
        %s1559 = sand.u32 %s369, 1
        %s1560 = smul.addr %s1559, 32
        %s1561 = scalar_lea.vmem [#allocation11], %s1560
        // Predicated region
        $region89: #{tpu_custom_call.1} parent=71 // pred_check
          %p1562 = pneg %p351
        $region90: #{tpu_custom_call.1} parent=71 // pred_check_branch
          %1564 = sbr.rel (%p1562) target = $region92
        $region91: #{tpu_custom_call.1} parent=71 // pred_region
          %1566 = vsyncadd %s1553, 0
          %s1567 = sadd.s32 %s39, %s38
          %s1568 = smul.addr %s1567, 8
          %s1569 = scalar_lea.hbm %s13, %s1568
          %s1571 = sshll.u32 %s1556, 4
          %s1572 = int_to_ptr.vmem [resolvable:$true] %s1571
          %s1573 = sshll.u32 %s1569, 4
          %s1574 = int_to_ptr.hbm [resolvable:$true] %s1573
          %1576 = dma.vmem_to_hbm [thread:$0]  %s1572, 128, %s1574, %s1553
        $region92: #{tpu_custom_call.1} parent=71 // pred_fallthru
          _
        // Predicated region
        $region93: #{tpu_custom_call.1} parent=71 // pred_check
          %p1577 = pneg %p379
        $region94: #{tpu_custom_call.1} parent=71 // pred_check_branch
          %1579 = sbr.rel (%p1577) target = $region96
        $region95: #{tpu_custom_call.1} parent=71 // pred_region
          %1581 = vsyncadd %s1558, 0
          %s1582 = smul.addr %s38, 4
          %s1583 = sadd.s32 %s39, %s1582
          %s1584 = smul.addr %s1583, 8
          %s1585 = scalar_lea.hbm %s14, %s1584
          %s1586 = sshll.u32 %s1561, 4
          %s1587 = int_to_ptr.vmem [resolvable:$true] %s1586
          %s1588 = sshll.u32 %s1585, 4
          %s1589 = int_to_ptr.hbm [resolvable:$true] %s1588
          %1594 = dma.vmem_to_hbm [thread:$0]  %s1587, 512, %s1589, %s1558, 128, 128, 8
        $region96: #{tpu_custom_call.1} parent=71 // pred_fallthru
          _
      $region72: #{tpu_custom_call.1} parent=5 // pred_fallthru
        _
      %p1595 = scmp.le.s32.totalorder 2, %s29
      // Predicated region
      $region97: #{tpu_custom_call.1} parent=5 // pred_check
        %p1596 = pneg %p1595
      $region98: #{tpu_custom_call.1} parent=5 // pred_check_branch
        %1598 = sbr.rel (%p1596) target = $region100
      $region99: #{tpu_custom_call.1} parent=5 // pred_region
        %s1599 = ssub.s32 %s29, 2
        // Predicated region
        $region101: #{tpu_custom_call.1} parent=99 // pred_check
          %p1600 = pneg %p357
        $region102: #{tpu_custom_call.1} parent=99 // pred_check_branch
          %1602 = sbr.rel (%p1600) target = $region104
        $region103: #{tpu_custom_call.1} parent=99 // pred_region
          %s1603 = sand.u32 %s342, 1
          %s1604 = scalar_lea.sflag [#allocation6], %s1603
          %s1605 = sand.u32 %s342, 1
          %s1606 = smul.addr %s1605, 8
          %s1607 = scalar_lea.vmem [#allocation10], %s1606
          %1609 = dma.done %s1604, 128
        $region104: #{tpu_custom_call.1} parent=99 // pred_fallthru
          _
        // Predicated region
        $region105: #{tpu_custom_call.1} parent=99 // pred_check
          %p1610 = pneg %p385
        $region106: #{tpu_custom_call.1} parent=99 // pred_check_branch
          %1612 = sbr.rel (%p1610) target = $region108
        $region107: #{tpu_custom_call.1} parent=99 // pred_region
          %s1613 = sand.u32 %s370, 1
          %s1614 = scalar_lea.sflag [#allocation12], %s1613
          %s1615 = sand.u32 %s370, 1
          %s1616 = smul.addr %s1615, 32
          %s1617 = scalar_lea.vmem [#allocation11], %s1616
          %1619 = dma.done %s1614, 512
        $region108: #{tpu_custom_call.1} parent=99 // pred_fallthru
          _
      $region100: #{tpu_custom_call.1} parent=5 // pred_fallthru
        _
    $region6: #{tpu_custom_call.1} parent=1 // loop_footer
      %s33 = sadd.s32 1, %s29
    $region7: #{tpu_custom_call.1} parent=1 // loop_footer_branch
      %28 = sbr.rel target = $region3
    $region8: #{tpu_custom_call.1} parent=1 // loop_exit
      _
    %1620 = vsyncpa [#allocation5], 1
    %s1621 = scalar_lea.sflag [#allocation5], 1
    %1622 = vsyncpa %s1621, 1
    %1623 = vsyncpa [#allocation8], 1
    %1624 = vsyncpa [#allocation6], 1
    %s1625 = scalar_lea.sflag [#allocation6], 1
    %1626 = vsyncpa %s1625, 1
    %1627 = vsyncpa [#allocation12], 1
    %s1628 = scalar_lea.sflag [#allocation12], 1
    %1629 = vsyncpa %s1628, 1

</llo_original>
